<compile_context>
chip_gen: v5e
topology: v5e:2x2
jax: 0.10.0
libtpu: 0.0.40
codegen_flags: <defaults>
</compile_context>

<pallas_src>
import functools

import jax
import jax.numpy as jnp
import numpy as np
from jax.experimental import pallas as pl
from jax.experimental.pallas import tpu as pltpu


# ----------------------------------------------------------------------------
# Fused kernel: expand(1x1)+BN+ReLU6 -> dw3x3+BN+ReLU6 -> project(1x1)+BN(+res)
# ----------------------------------------------------------------------------
def _fused_ir_kernel(x_ref, *rest, H, W, Cin, hidden, Cout, stride, TH, Wo,
                     identity, has_expand, cdt):
    if has_expand:
        (w_exp_ref, s1_ref, b1_ref,
         w_dw_ref, s2_ref, b2_ref,
         w_proj_ref, s3_ref, b3_ref, o_ref) = rest
    else:
        (w_dw_ref, s2_ref, b2_ref,
         w_proj_ref, s3_ref, b3_ref, o_ref) = rest

    t = pl.program_id(1)
    s = stride
    TH_in = (TH - 1) * s + 3                  # input rows needed for TH out rows
    row0 = t * TH * s - 1                     # first needed input row (may be -1)

    # ---- gather the TH_in input rows (clamped; out-of-image rows are masked
    #      to zero AFTER the expansion, matching the depthwise zero padding) ---
    rows = []
    for k in range(TH_in):
        src = jnp.clip(row0 + k, 0, H - 1)
        rows.append(x_ref[0, pl.ds(src, 1), :, :])      # (1, W, Cin)
    xwin = jnp.concatenate(rows, axis=0)                # (TH_in, W, Cin)

    # ---- 1x1 expansion + BN + ReLU6 (skipped when expand_ratio == 1) --------
    if has_expand:
        x2d = xwin.reshape(TH_in * W, Cin).astype(cdt)
        e2d = jnp.dot(x2d, w_exp_ref[...].astype(cdt),
                      preferred_element_type=jnp.float32)
        e2d = e2d * s1_ref[...] + b1_ref[...]
        e2d = jnp.clip(e2d, 0.0, 6.0)
        e = e2d.reshape(TH_in, W, hidden)
    else:
        e = xwin.astype(jnp.float32)                    # hidden == Cin

    # zero rows that fall outside the image (depthwise zero padding, rows)
    row_ids = row0 + jax.lax.broadcasted_iota(jnp.int32, (TH_in, 1, 1), 0)
    row_mask = ((row_ids >= 0) & (row_ids < H)).astype(jnp.float32)
    e = e * row_mask

    # zero-pad the columns (depthwise padding = 1)
    zcol = jnp.zeros((TH_in, 1, hidden), jnp.float32)
    hp = jnp.concatenate([zcol, e, zcol], axis=1)       # (TH_in, W + 2, hidden)

    # ---- 3x3 depthwise conv + BN + ReLU6 (stride handled natively) ----------
    acc = jnp.zeros((TH, Wo, hidden), jnp.float32)
    for ki in range(3):
        if s == 1:
            band = hp[ki: ki + TH]                      # (TH, W+2, hidden)
        else:
            band = hp[ki: ki + (TH - 1) * s + 1: s]
        for kj in range(3):
            kidx = ki * 3 + kj
            tap = w_dw_ref[kidx:kidx + 1, :].reshape(1, 1, hidden)
            if s == 1:
                sl = band[:, kj: kj + Wo, :]            # (TH, Wo, hidden)
            else:
                sl = band[:, kj: kj + (Wo - 1) * s + 1: s, :]
            acc = acc + sl * tap
    dw = acc * s2_ref[...].reshape(1, 1, hidden) + b2_ref[...].reshape(1, 1, hidden)
    dw = jnp.clip(dw, 0.0, 6.0)

    # ---- 1x1 projection + BN (+ fused residual) -----------------------------
    p2d = jnp.dot(dw.reshape(TH * Wo, hidden).astype(cdt),
                  w_proj_ref[...].astype(cdt),
                  preferred_element_type=jnp.float32)
    y = p2d * s3_ref[...] + b3_ref[...]
    if identity:
        # residual = original input rows of this tile (stride==1, Cin==Cout)
        res = x_ref[0, pl.ds(t * TH, TH), :, :]         # (TH, W, Cin)
        y = y + res.reshape(TH * Wo, Cout).astype(jnp.float32)

    o_ref[...] = y.reshape(1, TH, Wo, Cout).astype(o_ref.dtype)


# ----------------------------------------------------------------------------
# Wrapper
# ----------------------------------------------------------------------------
def _pick_row_tile(Ho, max_tile):
    for cand in range(min(max_tile, Ho), 0, -1):
        if Ho % cand == 0:
            return cand
    return Ho


def inverted_residual(params, x_nchw, *, inp, oup, stride, expand_ratio,
                      row_tile=8, compute_dtype=jnp.float32):
    assert stride in (1, 2)
    N, C, H, W = x_nchw.shape
    assert C == inp
    hidden = int(round(inp * expand_ratio))
    identity = (stride == 1) and (inp == oup)
    has_expand = expand_ratio != 1

    Ho = (H - 1) // stride + 1
    Wo = (W - 1) // stride + 1
    TH = _pick_row_tile(Ho, row_tile)
    T = Ho // TH

    x = jnp.transpose(x_nchw, (0, 2, 3, 1)).astype(jnp.float32)     # NHWC

    kernel = functools.partial(
        _fused_ir_kernel, H=H, W=W, Cin=inp, hidden=hidden, Cout=oup,
        stride=stride, TH=TH, Wo=Wo, identity=identity,
        has_expand=has_expand, cdt=compute_dtype)

    def const(n, t):
        return (0, 0)

    in_specs = [pl.BlockSpec((1, H, W, inp), lambda n, t: (n, 0, 0, 0))]
    args = [x]
    if has_expand:
        in_specs += [pl.BlockSpec((inp, hidden), const),
                     pl.BlockSpec((1, hidden), const),
                     pl.BlockSpec((1, hidden), const)]
        args += [params["w_exp"], params["s1"], params["b1"]]
    in_specs += [pl.BlockSpec((9, hidden), const),
                 pl.BlockSpec((1, hidden), const),
                 pl.BlockSpec((1, hidden), const),
                 pl.BlockSpec((hidden, oup), const),
                 pl.BlockSpec((1, oup), const),
                 pl.BlockSpec((1, oup), const)]
    args += [params["w_dw"], params["s2"], params["b2"],
             params["w_proj"], params["s3"], params["b3"]]

    y = pl.pallas_call(
        kernel,
        out_shape=jax.ShapeDtypeStruct((N, Ho, Wo, oup), jnp.float32),
        grid_spec=pltpu.PrefetchScalarGridSpec(
            num_scalar_prefetch=0,
            grid=(N, T),
            in_specs=in_specs,
            out_specs=pl.BlockSpec((1, TH, Wo, oup), lambda n, t: (n, t, 0, 0)),
        ),
        compiler_params=pltpu.CompilerParams(
            dimension_semantics=("parallel", "parallel"),
            vmem_limit_bytes=32 * 1024 * 1024),
    )(*args)
    return jnp.transpose(y, (0, 3, 1, 2))               # back to NCHW


# ----------------------------------------------------------------------------
# Parameters (folded inference BatchNorm)
# ----------------------------------------------------------------------------
def make_params(key, inp, oup, expand_ratio):
    hidden = int(round(inp * expand_ratio))
    ks = jax.random.split(key, 6)

    def folded_bn(k, c):
        k1, k2, k3, k4 = jax.random.split(k, 4)
        gamma = 1.0 + 0.1 * jax.random.normal(k1, (c,), jnp.float32)
        beta = 0.1 * jax.random.normal(k2, (c,), jnp.float32)
        mean = 0.1 * jax.random.normal(k3, (c,), jnp.float32)
        var = 1.0 + 0.1 * jax.random.uniform(k4, (c,), jnp.float32)
        scale = gamma / jnp.sqrt(var + 1e-5)
        bias = beta - mean * scale
        return scale.reshape(1, c), bias.reshape(1, c)

    params = {}
    if expand_ratio != 1:
        # PyTorch Conv2d weight (hidden, inp, 1, 1) -> (inp, hidden)
        params["w_exp"] = 0.3 * jax.random.normal(ks[0], (inp, hidden), jnp.float32)
        params["s1"], params["b1"] = folded_bn(ks[1], hidden)
    # depthwise weight (hidden, 1, 3, 3) -> (9, hidden), row k = tap (ki, kj)
    params["w_dw"] = 0.3 * jax.random.normal(ks[2], (9, hidden), jnp.float32)
    params["s2"], params["b2"] = folded_bn(ks[3], hidden)
    # projection weight (oup, hidden, 1, 1) -> (hidden, oup)
    params["w_proj"] = 0.3 * jax.random.normal(ks[4], (hidden, oup), jnp.float32)
    params["s3"], params["b3"] = folded_bn(ks[5], oup)
    return params


# ----------------------------------------------------------------------------
# Pure-JAX reference (for correctness check)
# ----------------------------------------------------------------------------
def reference(params, x_nchw, *, inp, oup, stride, expand_ratio):
    hidden = int(round(inp * expand_ratio))
    x = x_nchw.astype(jnp.float32)
    h = x
    dn = ("NCHW", "OIHW", "NCHW")
    if expand_ratio != 1:
        w = jnp.transpose(params["w_exp"]).reshape(hidden, inp, 1, 1)
        h = jax.lax.conv_general_dilated(h, w, (1, 1), "VALID", dimension_numbers=dn)
        h = h * params["s1"].reshape(1, hidden, 1, 1) + params["b1"].reshape(1, hidden, 1, 1)
        h = jnp.clip(h, 0.0, 6.0)
    wdw = params["w_dw"].reshape(3, 3, hidden)
    wdw = jnp.transpose(wdw, (2, 0, 1)).reshape(hidden, 1, 3, 3)
    h = jax.lax.conv_general_dilated(h, wdw, (stride, stride), ((1, 1), (1, 1)),
                                     dimension_numbers=dn, feature_group_count=hidden)
    h = h * params["s2"].reshape(1, hidden, 1, 1) + params["b2"].reshape(1, hidden, 1, 1)
    h = jnp.clip(h, 0.0, 6.0)
    w = jnp.transpose(params["w_proj"]).reshape(oup, hidden, 1, 1)
    h = jax.lax.conv_general_dilated(h, w, (1, 1), "VALID", dimension_numbers=dn)
    h = h * params["s3"].reshape(1, oup, 1, 1) + params["b3"].reshape(1, oup, 1, 1)
    if stride == 1 and inp == oup:
        h = h + x
    return h


# ----------------------------------------------------------------------------
if __name__ == "__main__":
    key = jax.random.PRNGKey(0)

    configs = [
        # (inp, oup, stride, expand_ratio, N, H, W)
        (8, 8, 1, 4, 2, 16, 16),     # expansion + identity residual path
        (16, 16, 1, 1, 2, 16, 16),   # expand_ratio == 1 path (depthwise first)
    ]
    for idx, (inp, oup, stride, er, N, H, W) in enumerate(configs):
        kx, kp = jax.random.split(jax.random.fold_in(key, idx))
        x = jax.random.normal(kx, (N, inp, H, W), jnp.float32)
        params = make_params(kp, inp, oup, er)

        fwd = jax.jit(functools.partial(inverted_residual, inp=inp, oup=oup,
                                        stride=stride, expand_ratio=er))
        y = fwd(params, x)
        jax.block_until_ready(y)

        y_ref = reference(params, x, inp=inp, oup=oup, stride=stride,
                          expand_ratio=er)
        Ho = (H - 1) // stride + 1
        Wo = (W - 1) // stride + 1
        assert y.shape == y_ref.shape == (N, oup, Ho, Wo)
        np.testing.assert_allclose(np.asarray(y), np.asarray(y_ref),
                                   rtol=2e-2, atol=2e-2)
    print("KERNEL_OK")
</pallas_src>

<mosaic_0001>
module attributes {stable_mosaic.version = 11 : i64} {
  func.func @_fused_ir_kernel(%arg0: i32, %arg1: i32, %arg2: memref<1x16x16x8xf32, #tpu.memory_space<vmem>>, %arg3: memref<8x32xf32, #tpu.memory_space<vmem>>, %arg4: memref<1x32xf32, #tpu.memory_space<vmem>>, %arg5: memref<1x32xf32, #tpu.memory_space<vmem>>, %arg6: memref<9x32xf32, #tpu.memory_space<vmem>>, %arg7: memref<1x32xf32, #tpu.memory_space<vmem>>, %arg8: memref<1x32xf32, #tpu.memory_space<vmem>>, %arg9: memref<32x8xf32, #tpu.memory_space<vmem>>, %arg10: memref<1x8xf32, #tpu.memory_space<vmem>>, %arg11: memref<1x8xf32, #tpu.memory_space<vmem>>, %arg12: memref<1x8x16x8xf32, #tpu.memory_space<vmem>>) attributes {dimension_semantics = [#tpu.dimension_semantics<parallel>, #tpu.dimension_semantics<parallel>], iteration_bounds = array<i64: 2, 2>, scalar_prefetch = 0 : i64, scratch_operands = 0 : i64, tpu.core_type = #tpu.core_type<tc>, window_params = [{transform_indices = @transform_0, window_bounds = array<i64: 1, 16, 16, 8>}, {pipeline_mode = #tpu.pipeline_mode<synchronous>, transform_indices = @transform_1, window_bounds = array<i64: 8, 32>}, {pipeline_mode = #tpu.pipeline_mode<synchronous>, transform_indices = @transform_2, window_bounds = array<i64: 1, 32>}, {pipeline_mode = #tpu.pipeline_mode<synchronous>, transform_indices = @transform_3, window_bounds = array<i64: 1, 32>}, {pipeline_mode = #tpu.pipeline_mode<synchronous>, transform_indices = @transform_4, window_bounds = array<i64: 9, 32>}, {pipeline_mode = #tpu.pipeline_mode<synchronous>, transform_indices = @transform_5, window_bounds = array<i64: 1, 32>}, {pipeline_mode = #tpu.pipeline_mode<synchronous>, transform_indices = @transform_6, window_bounds = array<i64: 1, 32>}, {pipeline_mode = #tpu.pipeline_mode<synchronous>, transform_indices = @transform_7, window_bounds = array<i64: 32, 8>}, {pipeline_mode = #tpu.pipeline_mode<synchronous>, transform_indices = @transform_8, window_bounds = array<i64: 1, 8>}, {pipeline_mode = #tpu.pipeline_mode<synchronous>, transform_indices = @transform_9, window_bounds = array<i64: 1, 8>}, {transform_indices = @transform_10, window_bounds = array<i64: 1, 8, 16, 8>}]} {
    %c8_i32 = arith.constant 8 : i32
    %0 = arith.muli %arg1, %c8_i32 : i32
    %c1_i32 = arith.constant 1 : i32
    %1 = arith.muli %0, %c1_i32 : i32
    %c1_i32_0 = arith.constant 1 : i32
    %2 = arith.subi %1, %c1_i32_0 : i32
    %c0_i32 = arith.constant 0 : i32
    %3 = arith.addi %2, %c0_i32 : i32
    %c0_i32_1 = arith.constant 0 : i32
    %c15_i32 = arith.constant 15 : i32
    %4 = arith.maxsi %c0_i32_1, %3 : i32
    %5 = arith.minsi %c15_i32, %4 : i32
    %c0 = arith.constant 0 : index
    %6 = arith.index_cast %5 : i32 to index
    %c0_2 = arith.constant 0 : index
    %c0_3 = arith.constant 0 : index
    %7 = vector.load %arg2[%c0, %6, %c0_2, %c0_3] : memref<1x16x16x8xf32, #tpu.memory_space<vmem>>, vector<1x1x16x8xf32>
    %8 = vector.shape_cast %7 : vector<1x1x16x8xf32> to vector<1x16x8xf32>
    %c1_i32_4 = arith.constant 1 : i32
    %9 = arith.addi %2, %c1_i32_4 : i32
    %c0_i32_5 = arith.constant 0 : i32
    %c15_i32_6 = arith.constant 15 : i32
    %10 = arith.maxsi %c0_i32_5, %9 : i32
    %11 = arith.minsi %c15_i32_6, %10 : i32
    %c0_7 = arith.constant 0 : index
    %12 = arith.index_cast %11 : i32 to index
    %c0_8 = arith.constant 0 : index
    %c0_9 = arith.constant 0 : index
    %13 = vector.load %arg2[%c0_7, %12, %c0_8, %c0_9] : memref<1x16x16x8xf32, #tpu.memory_space<vmem>>, vector<1x1x16x8xf32>
    %14 = vector.shape_cast %13 : vector<1x1x16x8xf32> to vector<1x16x8xf32>
    %c2_i32 = arith.constant 2 : i32
    %15 = arith.addi %2, %c2_i32 : i32
    %c0_i32_10 = arith.constant 0 : i32
    %c15_i32_11 = arith.constant 15 : i32
    %16 = arith.maxsi %c0_i32_10, %15 : i32
    %17 = arith.minsi %c15_i32_11, %16 : i32
    %c0_12 = arith.constant 0 : index
    %18 = arith.index_cast %17 : i32 to index
    %c0_13 = arith.constant 0 : index
    %c0_14 = arith.constant 0 : index
    %19 = vector.load %arg2[%c0_12, %18, %c0_13, %c0_14] : memref<1x16x16x8xf32, #tpu.memory_space<vmem>>, vector<1x1x16x8xf32>
    %20 = vector.shape_cast %19 : vector<1x1x16x8xf32> to vector<1x16x8xf32>
    %c3_i32 = arith.constant 3 : i32
    %21 = arith.addi %2, %c3_i32 : i32
    %c0_i32_15 = arith.constant 0 : i32
    %c15_i32_16 = arith.constant 15 : i32
    %22 = arith.maxsi %c0_i32_15, %21 : i32
    %23 = arith.minsi %c15_i32_16, %22 : i32
    %c0_17 = arith.constant 0 : index
    %24 = arith.index_cast %23 : i32 to index
    %c0_18 = arith.constant 0 : index
    %c0_19 = arith.constant 0 : index
    %25 = vector.load %arg2[%c0_17, %24, %c0_18, %c0_19] : memref<1x16x16x8xf32, #tpu.memory_space<vmem>>, vector<1x1x16x8xf32>
    %26 = vector.shape_cast %25 : vector<1x1x16x8xf32> to vector<1x16x8xf32>
    %c4_i32 = arith.constant 4 : i32
    %27 = arith.addi %2, %c4_i32 : i32
    %c0_i32_20 = arith.constant 0 : i32
    %c15_i32_21 = arith.constant 15 : i32
    %28 = arith.maxsi %c0_i32_20, %27 : i32
    %29 = arith.minsi %c15_i32_21, %28 : i32
    %c0_22 = arith.constant 0 : index
    %30 = arith.index_cast %29 : i32 to index
    %c0_23 = arith.constant 0 : index
    %c0_24 = arith.constant 0 : index
    %31 = vector.load %arg2[%c0_22, %30, %c0_23, %c0_24] : memref<1x16x16x8xf32, #tpu.memory_space<vmem>>, vector<1x1x16x8xf32>
    %32 = vector.shape_cast %31 : vector<1x1x16x8xf32> to vector<1x16x8xf32>
    %c5_i32 = arith.constant 5 : i32
    %33 = arith.addi %2, %c5_i32 : i32
    %c0_i32_25 = arith.constant 0 : i32
    %c15_i32_26 = arith.constant 15 : i32
    %34 = arith.maxsi %c0_i32_25, %33 : i32
    %35 = arith.minsi %c15_i32_26, %34 : i32
    %c0_27 = arith.constant 0 : index
    %36 = arith.index_cast %35 : i32 to index
    %c0_28 = arith.constant 0 : index
    %c0_29 = arith.constant 0 : index
    %37 = vector.load %arg2[%c0_27, %36, %c0_28, %c0_29] : memref<1x16x16x8xf32, #tpu.memory_space<vmem>>, vector<1x1x16x8xf32>
    %38 = vector.shape_cast %37 : vector<1x1x16x8xf32> to vector<1x16x8xf32>
    %c6_i32 = arith.constant 6 : i32
    %39 = arith.addi %2, %c6_i32 : i32
    %c0_i32_30 = arith.constant 0 : i32
    %c15_i32_31 = arith.constant 15 : i32
    %40 = arith.maxsi %c0_i32_30, %39 : i32
    %41 = arith.minsi %c15_i32_31, %40 : i32
    %c0_32 = arith.constant 0 : index
    %42 = arith.index_cast %41 : i32 to index
    %c0_33 = arith.constant 0 : index
    %c0_34 = arith.constant 0 : index
    %43 = vector.load %arg2[%c0_32, %42, %c0_33, %c0_34] : memref<1x16x16x8xf32, #tpu.memory_space<vmem>>, vector<1x1x16x8xf32>
    %44 = vector.shape_cast %43 : vector<1x1x16x8xf32> to vector<1x16x8xf32>
    %c7_i32 = arith.constant 7 : i32
    %45 = arith.addi %2, %c7_i32 : i32
    %c0_i32_35 = arith.constant 0 : i32
    %c15_i32_36 = arith.constant 15 : i32
    %46 = arith.maxsi %c0_i32_35, %45 : i32
    %47 = arith.minsi %c15_i32_36, %46 : i32
    %c0_37 = arith.constant 0 : index
    %48 = arith.index_cast %47 : i32 to index
    %c0_38 = arith.constant 0 : index
    %c0_39 = arith.constant 0 : index
    %49 = vector.load %arg2[%c0_37, %48, %c0_38, %c0_39] : memref<1x16x16x8xf32, #tpu.memory_space<vmem>>, vector<1x1x16x8xf32>
    %50 = vector.shape_cast %49 : vector<1x1x16x8xf32> to vector<1x16x8xf32>
    %c8_i32_40 = arith.constant 8 : i32
    %51 = arith.addi %2, %c8_i32_40 : i32
    %c0_i32_41 = arith.constant 0 : i32
    %c15_i32_42 = arith.constant 15 : i32
    %52 = arith.maxsi %c0_i32_41, %51 : i32
    %53 = arith.minsi %c15_i32_42, %52 : i32
    %c0_43 = arith.constant 0 : index
    %54 = arith.index_cast %53 : i32 to index
    %c0_44 = arith.constant 0 : index
    %c0_45 = arith.constant 0 : index
    %55 = vector.load %arg2[%c0_43, %54, %c0_44, %c0_45] : memref<1x16x16x8xf32, #tpu.memory_space<vmem>>, vector<1x1x16x8xf32>
    %56 = vector.shape_cast %55 : vector<1x1x16x8xf32> to vector<1x16x8xf32>
    %c9_i32 = arith.constant 9 : i32
    %57 = arith.addi %2, %c9_i32 : i32
    %c0_i32_46 = arith.constant 0 : i32
    %c15_i32_47 = arith.constant 15 : i32
    %58 = arith.maxsi %c0_i32_46, %57 : i32
    %59 = arith.minsi %c15_i32_47, %58 : i32
    %c0_48 = arith.constant 0 : index
    %60 = arith.index_cast %59 : i32 to index
    %c0_49 = arith.constant 0 : index
    %c0_50 = arith.constant 0 : index
    %61 = vector.load %arg2[%c0_48, %60, %c0_49, %c0_50] : memref<1x16x16x8xf32, #tpu.memory_space<vmem>>, vector<1x1x16x8xf32>
    %62 = vector.shape_cast %61 : vector<1x1x16x8xf32> to vector<1x16x8xf32>
    %63 = tpu.concatenate %8, %14, %20, %26, %32, %38, %44, %50, %56, %62 in 0 : vector<1x16x8xf32>, vector<1x16x8xf32>, vector<1x16x8xf32>, vector<1x16x8xf32>, vector<1x16x8xf32>, vector<1x16x8xf32>, vector<1x16x8xf32>, vector<1x16x8xf32>, vector<1x16x8xf32>, vector<1x16x8xf32> -> vector<10x16x8xf32>
    %64 = vector.shape_cast %63 : vector<10x16x8xf32> to vector<160x8xf32>
    %c0_51 = arith.constant 0 : index
    %c0_52 = arith.constant 0 : index
    %65 = vector.load %arg3[%c0_51, %c0_52] : memref<8x32xf32, #tpu.memory_space<vmem>>, vector<8x32xf32>
    %cst = arith.constant dense<0.000000e+00> : vector<160x32xf32>
    %66 = tpu.matmul %64, %65, %cst {dimension_numbers = #tpu.dot_dimension_numbers<[1], [0], [0], [1], [0, 0, 1, 1], [], []>} : vector<160x8xf32>, vector<8x32xf32>, vector<160x32xf32> -> vector<160x32xf32>
    %c0_53 = arith.constant 0 : index
    %c0_54 = arith.constant 0 : index
    %67 = vector.load %arg4[%c0_53, %c0_54] : memref<1x32xf32, #tpu.memory_space<vmem>>, vector<1x32xf32>
    %68 = vector.broadcast %67 : vector<1x32xf32> to vector<160x32xf32>
    %69 = arith.mulf %66, %68 : vector<160x32xf32>
    %c0_55 = arith.constant 0 : index
    %c0_56 = arith.constant 0 : index
    %70 = vector.load %arg5[%c0_55, %c0_56] : memref<1x32xf32, #tpu.memory_space<vmem>>, vector<1x32xf32>
    %71 = vector.broadcast %70 : vector<1x32xf32> to vector<160x32xf32>
    %72 = arith.addf %69, %71 : vector<160x32xf32>
    %cst_57 = arith.constant 0.000000e+00 : f32
    %cst_58 = arith.constant 6.000000e+00 : f32
    %73 = vector.broadcast %cst_57 : f32 to vector<160x32xf32>
    %74 = arith.maximumf %73, %72 : vector<160x32xf32>
    %75 = vector.broadcast %cst_58 : f32 to vector<160x32xf32>
    %76 = arith.minimumf %75, %74 : vector<160x32xf32>
    %77 = vector.shape_cast %76 : vector<160x32xf32> to vector<10x16x32xf32>
    %78 = tpu.iota {dimensions = array<i32: 0>} : vector<10x1x1xi32>
    %79 = vector.broadcast %2 : i32 to vector<10x1x1xi32>
    %80 = arith.addi %79, %78 : vector<10x1x1xi32>
    %c0_i32_59 = arith.constant 0 : i32
    %81 = vector.broadcast %c0_i32_59 : i32 to vector<10x1x1xi32>
    %82 = arith.cmpi sge, %80, %81 : vector<10x1x1xi32>
    %c16_i32 = arith.constant 16 : i32
    %83 = vector.broadcast %c16_i32 : i32 to vector<10x1x1xi32>
    %84 = arith.cmpi slt, %80, %83 : vector<10x1x1xi32>
    %85 = arith.andi %82, %84 : vector<10x1x1xi1>
    %86 = arith.extui %85 : vector<10x1x1xi1> to vector<10x1x1xi32>
    %87 = arith.sitofp %86 : vector<10x1x1xi32> to vector<10x1x1xf32>
    %88 = vector.broadcast %87 : vector<10x1x1xf32> to vector<10x16x32xf32>
    %89 = arith.mulf %77, %88 : vector<10x16x32xf32>
    %cst_60 = arith.constant 0.000000e+00 : f32
    %90 = vector.broadcast %cst_60 : f32 to vector<10x1x32xf32>
    %91 = tpu.concatenate %90, %89, %90 in 1 : vector<10x1x32xf32>, vector<10x16x32xf32>, vector<10x1x32xf32> -> vector<10x18x32xf32>
    %cst_61 = arith.constant 0.000000e+00 : f32
    %92 = vector.broadcast %cst_61 : f32 to vector<8x16x32xf32>
    %93 = vector.extract_strided_slice %91 {offsets = [0, 0, 0], sizes = [8, 18, 32], strides = [1, 1, 1]} : vector<10x18x32xf32> to vector<8x18x32xf32>
    %c0_62 = arith.constant 0 : index
    %c0_63 = arith.constant 0 : index
    %94 = vector.load %arg6[%c0_62, %c0_63] : memref<9x32xf32, #tpu.memory_space<vmem>>, vector<1x32xf32>
    %95 = vector.shape_cast %94 : vector<1x32xf32> to vector<1x1x32xf32>
    %96 = vector.extract_strided_slice %93 {offsets = [0, 0, 0], sizes = [8, 16, 32], strides = [1, 1, 1]} : vector<8x18x32xf32> to vector<8x16x32xf32>
    %97 = vector.broadcast %95 : vector<1x1x32xf32> to vector<8x16x32xf32>
    %98 = arith.mulf %96, %97 : vector<8x16x32xf32>
    %99 = arith.addf %92, %98 : vector<8x16x32xf32>
    %c1 = arith.constant 1 : index
    %c0_64 = arith.constant 0 : index
    %100 = vector.load %arg6[%c1, %c0_64] : memref<9x32xf32, #tpu.memory_space<vmem>>, vector<1x32xf32>
    %101 = vector.shape_cast %100 : vector<1x32xf32> to vector<1x1x32xf32>
    %102 = vector.extract_strided_slice %93 {offsets = [0, 1, 0], sizes = [8, 16, 32], strides = [1, 1, 1]} : vector<8x18x32xf32> to vector<8x16x32xf32>
    %103 = vector.broadcast %101 : vector<1x1x32xf32> to vector<8x16x32xf32>
    %104 = arith.mulf %102, %103 : vector<8x16x32xf32>
    %105 = arith.addf %99, %104 : vector<8x16x32xf32>
    %c2 = arith.constant 2 : index
    %c0_65 = arith.constant 0 : index
    %106 = vector.load %arg6[%c2, %c0_65] : memref<9x32xf32, #tpu.memory_space<vmem>>, vector<1x32xf32>
    %107 = vector.shape_cast %106 : vector<1x32xf32> to vector<1x1x32xf32>
    %108 = vector.extract_strided_slice %93 {offsets = [0, 2, 0], sizes = [8, 16, 32], strides = [1, 1, 1]} : vector<8x18x32xf32> to vector<8x16x32xf32>
    %109 = vector.broadcast %107 : vector<1x1x32xf32> to vector<8x16x32xf32>
    %110 = arith.mulf %108, %109 : vector<8x16x32xf32>
    %111 = arith.addf %105, %110 : vector<8x16x32xf32>
    %112 = vector.extract_strided_slice %91 {offsets = [1, 0, 0], sizes = [8, 18, 32], strides = [1, 1, 1]} : vector<10x18x32xf32> to vector<8x18x32xf32>
    %c3 = arith.constant 3 : index
    %c0_66 = arith.constant 0 : index
    %113 = vector.load %arg6[%c3, %c0_66] : memref<9x32xf32, #tpu.memory_space<vmem>>, vector<1x32xf32>
    %114 = vector.shape_cast %113 : vector<1x32xf32> to vector<1x1x32xf32>
    %115 = vector.extract_strided_slice %112 {offsets = [0, 0, 0], sizes = [8, 16, 32], strides = [1, 1, 1]} : vector<8x18x32xf32> to vector<8x16x32xf32>
    %116 = vector.broadcast %114 : vector<1x1x32xf32> to vector<8x16x32xf32>
    %117 = arith.mulf %115, %116 : vector<8x16x32xf32>
    %118 = arith.addf %111, %117 : vector<8x16x32xf32>
    %c4 = arith.constant 4 : index
    %c0_67 = arith.constant 0 : index
    %119 = vector.load %arg6[%c4, %c0_67] : memref<9x32xf32, #tpu.memory_space<vmem>>, vector<1x32xf32>
    %120 = vector.shape_cast %119 : vector<1x32xf32> to vector<1x1x32xf32>
    %121 = vector.extract_strided_slice %112 {offsets = [0, 1, 0], sizes = [8, 16, 32], strides = [1, 1, 1]} : vector<8x18x32xf32> to vector<8x16x32xf32>
    %122 = vector.broadcast %120 : vector<1x1x32xf32> to vector<8x16x32xf32>
    %123 = arith.mulf %121, %122 : vector<8x16x32xf32>
    %124 = arith.addf %118, %123 : vector<8x16x32xf32>
    %c5 = arith.constant 5 : index
    %c0_68 = arith.constant 0 : index
    %125 = vector.load %arg6[%c5, %c0_68] : memref<9x32xf32, #tpu.memory_space<vmem>>, vector<1x32xf32>
    %126 = vector.shape_cast %125 : vector<1x32xf32> to vector<1x1x32xf32>
    %127 = vector.extract_strided_slice %112 {offsets = [0, 2, 0], sizes = [8, 16, 32], strides = [1, 1, 1]} : vector<8x18x32xf32> to vector<8x16x32xf32>
    %128 = vector.broadcast %126 : vector<1x1x32xf32> to vector<8x16x32xf32>
    %129 = arith.mulf %127, %128 : vector<8x16x32xf32>
    %130 = arith.addf %124, %129 : vector<8x16x32xf32>
    %131 = vector.extract_strided_slice %91 {offsets = [2, 0, 0], sizes = [8, 18, 32], strides = [1, 1, 1]} : vector<10x18x32xf32> to vector<8x18x32xf32>
    %c6 = arith.constant 6 : index
    %c0_69 = arith.constant 0 : index
    %132 = vector.load %arg6[%c6, %c0_69] : memref<9x32xf32, #tpu.memory_space<vmem>>, vector<1x32xf32>
    %133 = vector.shape_cast %132 : vector<1x32xf32> to vector<1x1x32xf32>
    %134 = vector.extract_strided_slice %131 {offsets = [0, 0, 0], sizes = [8, 16, 32], strides = [1, 1, 1]} : vector<8x18x32xf32> to vector<8x16x32xf32>
    %135 = vector.broadcast %133 : vector<1x1x32xf32> to vector<8x16x32xf32>
    %136 = arith.mulf %134, %135 : vector<8x16x32xf32>
    %137 = arith.addf %130, %136 : vector<8x16x32xf32>
    %c7 = arith.constant 7 : index
    %c0_70 = arith.constant 0 : index
    %138 = vector.load %arg6[%c7, %c0_70] : memref<9x32xf32, #tpu.memory_space<vmem>>, vector<1x32xf32>
    %139 = vector.shape_cast %138 : vector<1x32xf32> to vector<1x1x32xf32>
    %140 = vector.extract_strided_slice %131 {offsets = [0, 1, 0], sizes = [8, 16, 32], strides = [1, 1, 1]} : vector<8x18x32xf32> to vector<8x16x32xf32>
    %141 = vector.broadcast %139 : vector<1x1x32xf32> to vector<8x16x32xf32>
    %142 = arith.mulf %140, %141 : vector<8x16x32xf32>
    %143 = arith.addf %137, %142 : vector<8x16x32xf32>
    %c8 = arith.constant 8 : index
    %c0_71 = arith.constant 0 : index
    %144 = vector.load %arg6[%c8, %c0_71] : memref<9x32xf32, #tpu.memory_space<vmem>>, vector<1x32xf32>
    %145 = vector.shape_cast %144 : vector<1x32xf32> to vector<1x1x32xf32>
    %146 = vector.extract_strided_slice %131 {offsets = [0, 2, 0], sizes = [8, 16, 32], strides = [1, 1, 1]} : vector<8x18x32xf32> to vector<8x16x32xf32>
    %147 = vector.broadcast %145 : vector<1x1x32xf32> to vector<8x16x32xf32>
    %148 = arith.mulf %146, %147 : vector<8x16x32xf32>
    %149 = arith.addf %143, %148 : vector<8x16x32xf32>
    %c0_72 = arith.constant 0 : index
    %c0_73 = arith.constant 0 : index
    %150 = vector.load %arg7[%c0_72, %c0_73] : memref<1x32xf32, #tpu.memory_space<vmem>>, vector<1x32xf32>
    %151 = vector.shape_cast %150 : vector<1x32xf32> to vector<1x1x32xf32>
    %152 = vector.broadcast %151 : vector<1x1x32xf32> to vector<8x16x32xf32>
    %153 = arith.mulf %149, %152 : vector<8x16x32xf32>
    %c0_74 = arith.constant 0 : index
    %c0_75 = arith.constant 0 : index
    %154 = vector.load %arg8[%c0_74, %c0_75] : memref<1x32xf32, #tpu.memory_space<vmem>>, vector<1x32xf32>
    %155 = vector.shape_cast %154 : vector<1x32xf32> to vector<1x1x32xf32>
    %156 = vector.broadcast %155 : vector<1x1x32xf32> to vector<8x16x32xf32>
    %157 = arith.addf %153, %156 : vector<8x16x32xf32>
    %cst_76 = arith.constant 0.000000e+00 : f32
    %cst_77 = arith.constant 6.000000e+00 : f32
    %158 = vector.broadcast %cst_76 : f32 to vector<8x16x32xf32>
    %159 = arith.maximumf %158, %157 : vector<8x16x32xf32>
    %160 = vector.broadcast %cst_77 : f32 to vector<8x16x32xf32>
    %161 = arith.minimumf %160, %159 : vector<8x16x32xf32>
    %162 = vector.shape_cast %161 : vector<8x16x32xf32> to vector<128x32xf32>
    %c0_78 = arith.constant 0 : index
    %c0_79 = arith.constant 0 : index
    %163 = vector.load %arg9[%c0_78, %c0_79] : memref<32x8xf32, #tpu.memory_space<vmem>>, vector<32x8xf32>
    %cst_80 = arith.constant dense<0.000000e+00> : vector<128x8xf32>
    %164 = tpu.matmul %162, %163, %cst_80 {dimension_numbers = #tpu.dot_dimension_numbers<[1], [0], [0], [1], [0, 0, 1, 1], [], []>} : vector<128x32xf32>, vector<32x8xf32>, vector<128x8xf32> -> vector<128x8xf32>
    %c0_81 = arith.constant 0 : index
    %c0_82 = arith.constant 0 : index
    %165 = vector.load %arg10[%c0_81, %c0_82] : memref<1x8xf32, #tpu.memory_space<vmem>>, vector<1x8xf32>
    %166 = vector.broadcast %165 : vector<1x8xf32> to vector<128x8xf32>
    %167 = arith.mulf %164, %166 : vector<128x8xf32>
    %c0_83 = arith.constant 0 : index
    %c0_84 = arith.constant 0 : index
    %168 = vector.load %arg11[%c0_83, %c0_84] : memref<1x8xf32, #tpu.memory_space<vmem>>, vector<1x8xf32>
    %169 = vector.broadcast %168 : vector<1x8xf32> to vector<128x8xf32>
    %170 = arith.addf %167, %169 : vector<128x8xf32>
    %c8_i32_85 = arith.constant 8 : i32
    %171 = arith.muli %arg1, %c8_i32_85 : i32
    %c0_86 = arith.constant 0 : index
    %172 = arith.index_cast %171 : i32 to index
    %c0_87 = arith.constant 0 : index
    %c0_88 = arith.constant 0 : index
    %173 = vector.load %arg2[%c0_86, %172, %c0_87, %c0_88] : memref<1x16x16x8xf32, #tpu.memory_space<vmem>>, vector<1x8x16x8xf32>
    %174 = vector.shape_cast %173 : vector<1x8x16x8xf32> to vector<8x16x8xf32>
    %175 = vector.shape_cast %174 : vector<8x16x8xf32> to vector<128x8xf32>
    %176 = arith.addf %170, %175 : vector<128x8xf32>
    %177 = vector.shape_cast %176 : vector<128x8xf32> to vector<1x8x16x8xf32>
    %c0_89 = arith.constant 0 : index
    %c0_90 = arith.constant 0 : index
    %c0_91 = arith.constant 0 : index
    %c0_92 = arith.constant 0 : index
    %178 = vector.load %arg12[%c0_89, %c0_90, %c0_91, %c0_92] : memref<1x8x16x8xf32, #tpu.memory_space<vmem>>, vector<1x8x16x8xf32>
    tpu.vector_store %arg12[%c0_89, %c0_90, %c0_91, %c0_92], %177 {strides = array<i32>} : memref<1x8x16x8xf32, #tpu.memory_space<vmem>>, vector<1x8x16x8xf32>,
    return
  }
  func.func @transform_0(%arg0: i32, %arg1: i32) -> (i32, i32, i32, i32) {
    %c0_i32 = arith.constant 0 : i32
    %c0_i32_0 = arith.constant 0 : i32
    %c0_i32_1 = arith.constant 0 : i32
    %c0_i32_2 = arith.constant 0 : i32
    return %arg0, %c0_i32, %c0_i32_0, %c0_i32_1 : i32, i32, i32, i32
  }
  func.func @transform_1(%arg0: i32, %arg1: i32) -> (i32, i32) {
    %c0_i32 = arith.constant 0 : i32
    %c0_i32_0 = arith.constant 0 : i32
    %c0_i32_1 = arith.constant 0 : i32
    return %c0_i32, %c0_i32_0 : i32, i32
  }
  func.func @transform_2(%arg0: i32, %arg1: i32) -> (i32, i32) {
    %c0_i32 = arith.constant 0 : i32
    %c0_i32_0 = arith.constant 0 : i32
    %c0_i32_1 = arith.constant 0 : i32
    return %c0_i32, %c0_i32_0 : i32, i32
  }
  func.func @transform_3(%arg0: i32, %arg1: i32) -> (i32, i32) {
    %c0_i32 = arith.constant 0 : i32
    %c0_i32_0 = arith.constant 0 : i32
    %c0_i32_1 = arith.constant 0 : i32
    return %c0_i32, %c0_i32_0 : i32, i32
  }
  func.func @transform_4(%arg0: i32, %arg1: i32) -> (i32, i32) {
    %c0_i32 = arith.constant 0 : i32
    %c0_i32_0 = arith.constant 0 : i32
    %c0_i32_1 = arith.constant 0 : i32
    return %c0_i32, %c0_i32_0 : i32, i32
  }
  func.func @transform_5(%arg0: i32, %arg1: i32) -> (i32, i32) {
    %c0_i32 = arith.constant 0 : i32
    %c0_i32_0 = arith.constant 0 : i32
    %c0_i32_1 = arith.constant 0 : i32
    return %c0_i32, %c0_i32_0 : i32, i32
  }
  func.func @transform_6(%arg0: i32, %arg1: i32) -> (i32, i32) {
    %c0_i32 = arith.constant 0 : i32
    %c0_i32_0 = arith.constant 0 : i32
    %c0_i32_1 = arith.constant 0 : i32
    return %c0_i32, %c0_i32_0 : i32, i32
  }
  func.func @transform_7(%arg0: i32, %arg1: i32) -> (i32, i32) {
    %c0_i32 = arith.constant 0 : i32
    %c0_i32_0 = arith.constant 0 : i32
    %c0_i32_1 = arith.constant 0 : i32
    return %c0_i32, %c0_i32_0 : i32, i32
  }
  func.func @transform_8(%arg0: i32, %arg1: i32) -> (i32, i32) {
    %c0_i32 = arith.constant 0 : i32
    %c0_i32_0 = arith.constant 0 : i32
    %c0_i32_1 = arith.constant 0 : i32
    return %c0_i32, %c0_i32_0 : i32, i32
  }
  func.func @transform_9(%arg0: i32, %arg1: i32) -> (i32, i32) {
    %c0_i32 = arith.constant 0 : i32
    %c0_i32_0 = arith.constant 0 : i32
    %c0_i32_1 = arith.constant 0 : i32
    return %c0_i32, %c0_i32_0 : i32, i32
  }
  func.func @transform_10(%arg0: i32, %arg1: i32) -> (i32, i32, i32, i32) {
    %c0_i32 = arith.constant 0 : i32
    %c0_i32_0 = arith.constant 0 : i32
    %c0_i32_1 = arith.constant 0 : i32
    return %arg0, %arg1, %c0_i32, %c0_i32_0 : i32, i32, i32, i32
  }
}

</mosaic_0001>

<llo_original>
// kernel: inverted_residual.1
$region0: #{inverted_residual.1}
  #allocation0 [shape = 'u32[]', space=smem, size = 0x4, offset = 0x4, fixed_abs, tag = 'smem constant byte address 0x4 - core index']
  #allocation1 [shape = 'u32[72,128]{1,0:T(1,128)}', space=vmem, size = 0x9000, scoped, tag = 'internal scratch']
  %s0 = inlined_call_operand.vmem [shape: f32[2,16,16,8], index: 0, kind: input, shape index: {}]
  %s1 = inlined_call_operand.vmem [shape: f32[8,32], index: 1, kind: input, shape index: {}]
  %s2 = inlined_call_operand.vmem [shape: f32[1,32], index: 2, kind: input, shape index: {}]
  %s3 = inlined_call_operand.vmem [shape: f32[1,32], index: 3, kind: input, shape index: {}]
  %s4 = inlined_call_operand.vmem [shape: f32[9,32], index: 4, kind: input, shape index: {}]
  %s5 = inlined_call_operand.vmem [shape: f32[1,32], index: 5, kind: input, shape index: {}]
  %s6 = inlined_call_operand.vmem [shape: f32[1,32], index: 6, kind: input, shape index: {}]
  %s7 = inlined_call_operand.vmem [shape: f32[32,8], index: 7, kind: input, shape index: {}]
  %s8 = inlined_call_operand.vmem [shape: f32[1,8], index: 8, kind: input, shape index: {}]
  %s9 = inlined_call_operand.vmem [shape: f32[1,8], index: 9, kind: input, shape index: {}]
  %s10 = inlined_call_operand.vmem [shape: f32[2,16,16,8], index: 10, kind: output, shape index: {}]
  %s11 = sld [smem:[#allocation0]]
  $region73: #{inverted_residual.1} parent=0
    _
  %s13 = ssub.s32 1, %s11
  %s14 = scalar_select 0, %s13, %s11
  loop: start=0, step=1, limit=6
  $region2: #{inverted_residual.1} parent=0 // loop_pre_header
    _
  $region3: #{inverted_residual.1} parent=0 // loop_header
    %s16 = sphi 0, %s20
    %p17 = scmp.ge.s32.totalorder %s16, 6
    %s23 = sphi 0, %s35
    %s24 = sphi 0, %s31
    %s25 = sphi 0, %s23
    %s26 = sphi 0, %s24
    %s27 = sphi 0, %s25
    %s28 = sphi 0, %s26
    %s38 = sphi 0, %s40
    %s41 = sphi 0, %s38
    %s42 = sphi 0, %s41
    %s58 = sphi 0, %s42
    %s62 = sphi 0, %s62
    %s64 = sphi 0, %s62
    %s65 = sphi 0, %s64
    %s79 = sphi 0, %s65
    %s83 = sphi 0, %s83
    %s85 = sphi 0, %s83
    %s86 = sphi 0, %s85
    %s100 = sphi 0, %s86
    %s104 = sphi 0, %s104
    %s106 = sphi 0, %s104
    %s107 = sphi 0, %s106
    %s121 = sphi 0, %s107
    %s125 = sphi 0, %s125
    %s127 = sphi 0, %s125
    %s128 = sphi 0, %s127
    %s142 = sphi 0, %s128
    %s146 = sphi 0, %s146
    %s148 = sphi 0, %s146
    %s149 = sphi 0, %s148
    %s163 = sphi 0, %s149
    %s167 = sphi 0, %s167
    %s169 = sphi 0, %s167
    %s170 = sphi 0, %s169
    %s184 = sphi 0, %s170
    %s188 = sphi 0, %s188
    %s190 = sphi 0, %s188
    %s191 = sphi 0, %s190
    %s205 = sphi 0, %s191
    %s209 = sphi 0, %s209
    %s211 = sphi 0, %s209
    %s212 = sphi 0, %s211
    %s226 = sphi 0, %s212
    %s230 = sphi 0, %s230
    %s232 = sphi 0, %s230
    %s233 = sphi 0, %s232
    %s247 = sphi 0, %s233
    %s255 = sphi 0, %s257
    %s258 = sphi 0, %s255
    %s259 = sphi 0, %s258
    %s275 = sphi 0, %s259
  $region4: #{inverted_residual.1} parent=0 // loop_header_branch
    %19 = sbr.rel (%p17) target = $region8
  $region5: #{inverted_residual.1} parent=0 // loop_body
    %s21 = ssub.s32 %s16, 1
    %s22 = ssub.s32 %s16, 2
    %s29 = sadd.s32 1, %s24
    %p30 = scmp.ge.s32.totalorder %s29, 2
    %s31 = scalar_select %p30, 0, %s29
    %s32 = sadd.s32 1, %s23
    %s33 = scalar_select %p30, %s32, %s23
    %p34 = scmp.ge.s32.totalorder %s33, 2
    %s35 = scalar_select %p34, 0, %s33
    %s36 = ssub.s32 %s23, %s35
    %p37 = scmp.eq.s32.totalorder %s36, 0
    %s39 = sadd.s32 %s38, 1
    %s40 = scalar_select %p37, %s38, %s39
    %p43 = pneg %p37
    %p44 = scmp.eq.s32.totalorder %s16, 3
    %p45 = por %p43, %p44
    %p46 = scmp.ne.s32.totalorder %s38, %s41
    %p47 = scmp.eq.s32.totalorder %s16, 0
    %p48 = por %p46, %p47
    %p49 = scmp.ne.s32.totalorder %s38, %s41
    %p50 = scmp.eq.s32.totalorder %s21, 3
    %p51 = por %p49, %p50
    %p52 = scmp.ne.s32.totalorder %s41, %s42
    %p53 = scmp.eq.s32.totalorder %s21, 0
    %p54 = por %p52, %p53
    %p55 = scmp.ne.s32.totalorder %s41, %s42
    %p56 = scmp.eq.s32.totalorder %s22, 3
    %p57 = por %p55, %p56
    %p59 = scmp.ne.s32.totalorder %s42, %s58
    %p60 = scmp.eq.s32.totalorder %s22, 0
    %p61 = por %p59, %p60
    %s63 = sadd.s32 %s62, 1
    %p66 = scmp.eq.s32.totalorder %s16, 3
    %p67 = scmp.ne.s32.totalorder %s62, %s64
    %p68 = scmp.eq.s32.totalorder %s16, 0
    %p69 = por %p67, %p68
    %p70 = scmp.ne.s32.totalorder %s62, %s64
    %p71 = scmp.eq.s32.totalorder %s21, 3
    %p72 = por %p70, %p71
    %p73 = scmp.ne.s32.totalorder %s64, %s65
    %p74 = scmp.eq.s32.totalorder %s21, 0
    %p75 = por %p73, %p74
    %p76 = scmp.ne.s32.totalorder %s64, %s65
    %p77 = scmp.eq.s32.totalorder %s22, 3
    %p78 = por %p76, %p77
    %p80 = scmp.ne.s32.totalorder %s65, %s79
    %p81 = scmp.eq.s32.totalorder %s22, 0
    %p82 = por %p80, %p81
    %s84 = sadd.s32 %s83, 1
    %p87 = scmp.eq.s32.totalorder %s16, 3
    %p88 = scmp.ne.s32.totalorder %s83, %s85
    %p89 = scmp.eq.s32.totalorder %s16, 0
    %p90 = por %p88, %p89
    %p91 = scmp.ne.s32.totalorder %s83, %s85
    %p92 = scmp.eq.s32.totalorder %s21, 3
    %p93 = por %p91, %p92
    %p94 = scmp.ne.s32.totalorder %s85, %s86
    %p95 = scmp.eq.s32.totalorder %s21, 0
    %p96 = por %p94, %p95
    %p97 = scmp.ne.s32.totalorder %s85, %s86
    %p98 = scmp.eq.s32.totalorder %s22, 3
    %p99 = por %p97, %p98
    %p101 = scmp.ne.s32.totalorder %s86, %s100
    %p102 = scmp.eq.s32.totalorder %s22, 0
    %p103 = por %p101, %p102
    %s105 = sadd.s32 %s104, 1
    %p108 = scmp.eq.s32.totalorder %s16, 3
    %p109 = scmp.ne.s32.totalorder %s104, %s106
    %p110 = scmp.eq.s32.totalorder %s16, 0
    %p111 = por %p109, %p110
    %p112 = scmp.ne.s32.totalorder %s104, %s106
    %p113 = scmp.eq.s32.totalorder %s21, 3
    %p114 = por %p112, %p113
    %p115 = scmp.ne.s32.totalorder %s106, %s107
    %p116 = scmp.eq.s32.totalorder %s21, 0
    %p117 = por %p115, %p116
    %p118 = scmp.ne.s32.totalorder %s106, %s107
    %p119 = scmp.eq.s32.totalorder %s22, 3
    %p120 = por %p118, %p119
    %p122 = scmp.ne.s32.totalorder %s107, %s121
    %p123 = scmp.eq.s32.totalorder %s22, 0
    %p124 = por %p122, %p123
    %s126 = sadd.s32 %s125, 1
    %p129 = scmp.eq.s32.totalorder %s16, 3
    %p130 = scmp.ne.s32.totalorder %s125, %s127
    %p131 = scmp.eq.s32.totalorder %s16, 0
    %p132 = por %p130, %p131
    %p133 = scmp.ne.s32.totalorder %s125, %s127
    %p134 = scmp.eq.s32.totalorder %s21, 3
    %p135 = por %p133, %p134
    %p136 = scmp.ne.s32.totalorder %s127, %s128
    %p137 = scmp.eq.s32.totalorder %s21, 0
    %p138 = por %p136, %p137
    %p139 = scmp.ne.s32.totalorder %s127, %s128
    %p140 = scmp.eq.s32.totalorder %s22, 3
    %p141 = por %p139, %p140
    %p143 = scmp.ne.s32.totalorder %s128, %s142
    %p144 = scmp.eq.s32.totalorder %s22, 0
    %p145 = por %p143, %p144
    %s147 = sadd.s32 %s146, 1
    %p150 = scmp.eq.s32.totalorder %s16, 3
    %p151 = scmp.ne.s32.totalorder %s146, %s148
    %p152 = scmp.eq.s32.totalorder %s16, 0
    %p153 = por %p151, %p152
    %p154 = scmp.ne.s32.totalorder %s146, %s148
    %p155 = scmp.eq.s32.totalorder %s21, 3
    %p156 = por %p154, %p155
    %p157 = scmp.ne.s32.totalorder %s148, %s149
    %p158 = scmp.eq.s32.totalorder %s21, 0
    %p159 = por %p157, %p158
    %p160 = scmp.ne.s32.totalorder %s148, %s149
    %p161 = scmp.eq.s32.totalorder %s22, 3
    %p162 = por %p160, %p161
    %p164 = scmp.ne.s32.totalorder %s149, %s163
    %p165 = scmp.eq.s32.totalorder %s22, 0
    %p166 = por %p164, %p165
    %s168 = sadd.s32 %s167, 1
    %p171 = scmp.eq.s32.totalorder %s16, 3
    %p172 = scmp.ne.s32.totalorder %s167, %s169
    %p173 = scmp.eq.s32.totalorder %s16, 0
    %p174 = por %p172, %p173
    %p175 = scmp.ne.s32.totalorder %s167, %s169
    %p176 = scmp.eq.s32.totalorder %s21, 3
    %p177 = por %p175, %p176
    %p178 = scmp.ne.s32.totalorder %s169, %s170
    %p179 = scmp.eq.s32.totalorder %s21, 0
    %p180 = por %p178, %p179
    %p181 = scmp.ne.s32.totalorder %s169, %s170
    %p182 = scmp.eq.s32.totalorder %s22, 3
    %p183 = por %p181, %p182
    %p185 = scmp.ne.s32.totalorder %s170, %s184
    %p186 = scmp.eq.s32.totalorder %s22, 0
    %p187 = por %p185, %p186
    %s189 = sadd.s32 %s188, 1
    %p192 = scmp.eq.s32.totalorder %s16, 3
    %p193 = scmp.ne.s32.totalorder %s188, %s190
    %p194 = scmp.eq.s32.totalorder %s16, 0
    %p195 = por %p193, %p194
    %p196 = scmp.ne.s32.totalorder %s188, %s190
    %p197 = scmp.eq.s32.totalorder %s21, 3
    %p198 = por %p196, %p197
    %p199 = scmp.ne.s32.totalorder %s190, %s191
    %p200 = scmp.eq.s32.totalorder %s21, 0
    %p201 = por %p199, %p200
    %p202 = scmp.ne.s32.totalorder %s190, %s191
    %p203 = scmp.eq.s32.totalorder %s22, 3
    %p204 = por %p202, %p203
    %p206 = scmp.ne.s32.totalorder %s191, %s205
    %p207 = scmp.eq.s32.totalorder %s22, 0
    %p208 = por %p206, %p207
    %s210 = sadd.s32 %s209, 1
    %p213 = scmp.eq.s32.totalorder %s16, 3
    %p214 = scmp.ne.s32.totalorder %s209, %s211
    %p215 = scmp.eq.s32.totalorder %s16, 0
    %p216 = por %p214, %p215
    %p217 = scmp.ne.s32.totalorder %s209, %s211
    %p218 = scmp.eq.s32.totalorder %s21, 3
    %p219 = por %p217, %p218
    %p220 = scmp.ne.s32.totalorder %s211, %s212
    %p221 = scmp.eq.s32.totalorder %s21, 0
    %p222 = por %p220, %p221
    %p223 = scmp.ne.s32.totalorder %s211, %s212
    %p224 = scmp.eq.s32.totalorder %s22, 3
    %p225 = por %p223, %p224
    %p227 = scmp.ne.s32.totalorder %s212, %s226
    %p228 = scmp.eq.s32.totalorder %s22, 0
    %p229 = por %p227, %p228
    %s231 = sadd.s32 %s230, 1
    %p234 = scmp.eq.s32.totalorder %s16, 3
    %p235 = scmp.ne.s32.totalorder %s230, %s232
    %p236 = scmp.eq.s32.totalorder %s16, 0
    %p237 = por %p235, %p236
    %p238 = scmp.ne.s32.totalorder %s230, %s232
    %p239 = scmp.eq.s32.totalorder %s21, 3
    %p240 = por %p238, %p239
    %p241 = scmp.ne.s32.totalorder %s232, %s233
    %p242 = scmp.eq.s32.totalorder %s21, 0
    %p243 = por %p241, %p242
    %p244 = scmp.ne.s32.totalorder %s232, %s233
    %p245 = scmp.eq.s32.totalorder %s22, 3
    %p246 = por %p244, %p245
    %p248 = scmp.ne.s32.totalorder %s233, %s247
    %p249 = scmp.eq.s32.totalorder %s22, 0
    %p250 = por %p248, %p249
    %s251 = ssub.s32 %s23, %s35
    %s252 = ssub.s32 %s24, %s31
    %s253 = sor.u32 %s251, %s252
    %p254 = scmp.eq.s32.totalorder %s253, 0
    %s256 = sadd.s32 %s255, 1
    %s257 = scalar_select %p254, %s255, %s256
    %p260 = pneg %p254
    %p261 = scmp.eq.s32.totalorder %s16, 3
    %p262 = por %p260, %p261
    %p263 = scmp.ne.s32.totalorder %s255, %s258
    %p264 = scmp.eq.s32.totalorder %s16, 0
    %p265 = por %p263, %p264
    %p266 = scmp.ne.s32.totalorder %s255, %s258
    %p267 = scmp.eq.s32.totalorder %s21, 3
    %p268 = por %p266, %p267
    %p269 = scmp.ne.s32.totalorder %s258, %s259
    %p270 = scmp.eq.s32.totalorder %s21, 0
    %p271 = por %p269, %p270
    %p272 = scmp.ne.s32.totalorder %s258, %s259
    %p273 = scmp.eq.s32.totalorder %s22, 3
    %p274 = por %p272, %p273
    %p276 = scmp.ne.s32.totalorder %s259, %s275
    %p277 = scmp.eq.s32.totalorder %s22, 0
    %p278 = por %p276, %p277
    %p279 = scmp.le.s32.totalorder 1, %s16
    %p280 = scmp.lt.s32.totalorder %s16, 5
    %p281 = pnand %p279, %p280
    %p282 = pneg %p281
    // Predicated region
    $region9: #{inverted_residual.1} parent=5 // pred_check
      _
    $region10: #{inverted_residual.1} parent=5 // pred_check_branch
      %284 = sbr.rel (%p281) target = $region12
    $region11: #{inverted_residual.1} parent=5 // pred_region
      %s285 = ssub.s32 %s16, 1
      // Predicated region
      $region13: #{inverted_residual.1} parent=11 // pred_check
        %p286 = pneg %p75
      $region14: #{inverted_residual.1} parent=11 // pred_check_branch
        %288 = sbr.rel (%p286) target = $region16
      $region15: #{inverted_residual.1} parent=11 // pred_region
        _
      $region16: #{inverted_residual.1} parent=11 // pred_fallthru
        _
      // Predicated region
      $region17: #{inverted_residual.1} parent=11 // pred_check
        %p289 = pneg %p96
      $region18: #{inverted_residual.1} parent=11 // pred_check_branch
        %291 = sbr.rel (%p289) target = $region20
      $region19: #{inverted_residual.1} parent=11 // pred_region
        _
      $region20: #{inverted_residual.1} parent=11 // pred_fallthru
        _
      // Predicated region
      $region21: #{inverted_residual.1} parent=11 // pred_check
        %p292 = pneg %p117
      $region22: #{inverted_residual.1} parent=11 // pred_check_branch
        %294 = sbr.rel (%p292) target = $region24
      $region23: #{inverted_residual.1} parent=11 // pred_region
        _
      $region24: #{inverted_residual.1} parent=11 // pred_fallthru
        _
      // Predicated region
      $region25: #{inverted_residual.1} parent=11 // pred_check
        %p295 = pneg %p138
      $region26: #{inverted_residual.1} parent=11 // pred_check_branch
        %297 = sbr.rel (%p295) target = $region28
      $region27: #{inverted_residual.1} parent=11 // pred_region
        _
      $region28: #{inverted_residual.1} parent=11 // pred_fallthru
        _
      // Predicated region
      $region29: #{inverted_residual.1} parent=11 // pred_check
        %p298 = pneg %p159
      $region30: #{inverted_residual.1} parent=11 // pred_check_branch
        %300 = sbr.rel (%p298) target = $region32
      $region31: #{inverted_residual.1} parent=11 // pred_region
        _
      $region32: #{inverted_residual.1} parent=11 // pred_fallthru
        _
      // Predicated region
      $region33: #{inverted_residual.1} parent=11 // pred_check
        %p301 = pneg %p180
      $region34: #{inverted_residual.1} parent=11 // pred_check_branch
        %303 = sbr.rel (%p301) target = $region36
      $region35: #{inverted_residual.1} parent=11 // pred_region
        _
      $region36: #{inverted_residual.1} parent=11 // pred_fallthru
        _
      // Predicated region
      $region37: #{inverted_residual.1} parent=11 // pred_check
        %p304 = pneg %p201
      $region38: #{inverted_residual.1} parent=11 // pred_check_branch
        %306 = sbr.rel (%p304) target = $region40
      $region39: #{inverted_residual.1} parent=11 // pred_region
        _
      $region40: #{inverted_residual.1} parent=11 // pred_fallthru
        _
      // Predicated region
      $region41: #{inverted_residual.1} parent=11 // pred_check
        %p307 = pneg %p222
      $region42: #{inverted_residual.1} parent=11 // pred_check_branch
        %309 = sbr.rel (%p307) target = $region44
      $region43: #{inverted_residual.1} parent=11 // pred_region
        _
      $region44: #{inverted_residual.1} parent=11 // pred_fallthru
        _
      // Predicated region
      $region45: #{inverted_residual.1} parent=11 // pred_check
        %p310 = pneg %p243
      $region46: #{inverted_residual.1} parent=11 // pred_check_branch
        %312 = sbr.rel (%p310) target = $region48
      $region47: #{inverted_residual.1} parent=11 // pred_region
        _
      $region48: #{inverted_residual.1} parent=11 // pred_fallthru
        _
    $region12: #{inverted_residual.1} parent=5 // pred_fallthru
      _
    %p313 = scmp.lt.s32.totalorder %s16, 4
    // Predicated region
    $region49: #{inverted_residual.1} parent=5 // pred_check
      %p314 = pneg %p313
    $region50: #{inverted_residual.1} parent=5 // pred_check_branch
      %316 = sbr.rel (%p314) target = $region52
    $region51: #{inverted_residual.1} parent=5 // pred_region
      // Predicated region
      $region53: #{inverted_residual.1} parent=51 // pred_check
        %p317 = pneg %p48
      $region54: #{inverted_residual.1} parent=51 // pred_check_branch
        %319 = sbr.rel (%p317) target = $region56
      $region55: #{inverted_residual.1} parent=51 // pred_region
        %p320 = scmp.lt.s32.totalorder %s23, 1
        %s321 = scalar_select %p320, %s23, 1
        %s322 = smul.addr %s321, 32
        %s323 = smul.addr %s322, 8
        %s324 = scalar_lea.vmem %s0, %s323
      $region56: #{inverted_residual.1} parent=51 // pred_fallthru
        _
    $region52: #{inverted_residual.1} parent=5 // pred_fallthru
      _
    %p325 = scmp.le.s32.totalorder 1, %s16
    %p326 = scmp.lt.s32.totalorder %s16, 5
    %p327 = pnand %p325, %p326
    %p328 = pneg %p327
    // Predicated region
    $region57: #{inverted_residual.1} parent=5 // pred_check
      _
    $region58: #{inverted_residual.1} parent=5 // pred_check_branch
      %330 = sbr.rel (%p327) target = $region60
    $region59: #{inverted_residual.1} parent=5 // pred_region
      %s331 = ssub.s32 %s16, 1
      %p332 = scmp.lt.s32.totalorder %s25, 1
      %s333 = scalar_select %p332, %s25, 1
      %s334 = smul.addr %s333, 32
      %s335 = smul.addr %s334, 8
      %s336 = scalar_lea.vmem %s0, %s335
      %p337 = pneg %p54
      %p338 = pneg %p51
      %p339 = pneg %p75
      %p340 = pneg %p72
      %p341 = pneg %p96
      %p342 = pneg %p93
      %p343 = pneg %p117
      %p344 = pneg %p114
      %p345 = pneg %p138
      %p346 = pneg %p135
      %p347 = pneg %p159
      %p348 = pneg %p156
      %p349 = pneg %p180
      %p350 = pneg %p177
      %p351 = pneg %p201
      %p352 = pneg %p198
      %p353 = pneg %p222
      %p354 = pneg %p219
      %p355 = pneg %p243
      %p356 = pneg %p240
      %p357 = pneg %p271
      %p358 = pneg %p268
      %s359 = smul.u32 8, %s26
      %p360 = scmp.lt.s32.totalorder %s25, 1
      %s361 = scalar_select %p360, %s25, 1
      %p362 = scmp.lt.s32.totalorder %s359, 15
      %s363 = scalar_select %p362, %s359, 15
      %s364 = smul.addr %s363, 2
      %s365 = smul.addr %s361, 32
      %s366 = sadd.s32 %s364, %s365
      %s367 = smul.addr %s366, 8
      %s368 = scalar_lea.vmem %s10, %s367
      %p369 = scmp.lt.s32.totalorder %s25, 1
      %s370 = scalar_select %p369, %s25, 1
      %s371 = smul.addr %s370, 32
      %s372 = smul.addr %s371, 8
      %s373 = scalar_lea.vmem %s0, %s372
      %s374 = smul.u32 8, %s26
      %p375 = scmp.lt.s32.totalorder %s25, 1
      %s376 = scalar_select %p375, %s25, 1
      %p377 = scmp.lt.s32.totalorder %s374, 15
      %s378 = scalar_select %p377, %s374, 15
      %s379 = smul.addr %s378, 2
      %s380 = smul.addr %s376, 32
      %s381 = sadd.s32 %s379, %s380
      %s382 = smul.addr %s381, 8
      %s383 = scalar_lea.vmem %s10, %s382
      %s384 = smul.u32 8, %s26
      %s385 = smul.u32 %s26, 8
      %s386 = ssub.s32 %s385, 1
      %p387 = scmp.gt.s32.totalorder %s386, 0
      %s388 = scalar_select %p387, %s386, 0
      %p389 = scmp.lt.s32.totalorder %s388, 15
      %s390 = scalar_select %p389, %s388, 15
      %s391 = smul.u32 %s390, 16
      %s392 = scalar_lea.vmem %s373, %s391
      %v393 = vld [vmem:[%s392] sm:$0xff]
      %v394 = vld [vmem:[%s392 + $0x8] sm:$0xff]
      %p395 = scmp.gt.s32.totalorder %s385, 0
      %s396 = scalar_select %p395, %s385, 0
      %p397 = scmp.lt.s32.totalorder %s396, 15
      %s398 = scalar_select %p397, %s396, 15
      %s399 = smul.u32 %s398, 16
      %s400 = scalar_lea.vmem %s373, %s399
      %v401 = vld [vmem:[%s400] sm:$0xff]
      %v402 = vld [vmem:[%s400 + $0x8] sm:$0xff]
      %s403 = sadd.s32 %s385, 1
      %p404 = scmp.gt.s32.totalorder %s403, 0
      %s405 = scalar_select %p404, %s403, 0
      %p406 = scmp.lt.s32.totalorder %s405, 15
      %s407 = scalar_select %p406, %s405, 15
      %s408 = smul.u32 %s407, 16
      %s409 = scalar_lea.vmem %s373, %s408
      %v410 = vld [vmem:[%s409] sm:$0xff]
      %v411 = vld [vmem:[%s409 + $0x8] sm:$0xff]
      %s412 = sadd.s32 %s385, 2
      %p413 = scmp.gt.s32.totalorder %s412, 0
      %s414 = scalar_select %p413, %s412, 0
      %p415 = scmp.lt.s32.totalorder %s414, 15
      %s416 = scalar_select %p415, %s414, 15
      %s417 = smul.u32 %s416, 16
      %s418 = scalar_lea.vmem %s373, %s417
      %v419 = vld [vmem:[%s418] sm:$0xff]
      %v420 = vld [vmem:[%s418 + $0x8] sm:$0xff]
      %s421 = sadd.s32 %s385, 3
      %p422 = scmp.gt.s32.totalorder %s421, 0
      %s423 = scalar_select %p422, %s421, 0
      %p424 = scmp.lt.s32.totalorder %s423, 15
      %s425 = scalar_select %p424, %s423, 15
      %s426 = smul.u32 %s425, 16
      %s427 = scalar_lea.vmem %s373, %s426
      %v428 = vld [vmem:[%s427] sm:$0xff]
      %v429 = vld [vmem:[%s427 + $0x8] sm:$0xff]
      %s430 = sadd.s32 %s385, 4
      %p431 = scmp.gt.s32.totalorder %s430, 0
      %s432 = scalar_select %p431, %s430, 0
      %p433 = scmp.lt.s32.totalorder %s432, 15
      %s434 = scalar_select %p433, %s432, 15
      %s435 = smul.u32 %s434, 16
      %s436 = scalar_lea.vmem %s373, %s435
      %v437 = vld [vmem:[%s436] sm:$0xff]
      %v438 = vld [vmem:[%s436 + $0x8] sm:$0xff]
      %s439 = sadd.s32 %s385, 5
      %p440 = scmp.gt.s32.totalorder %s439, 0
      %s441 = scalar_select %p440, %s439, 0
      %p442 = scmp.lt.s32.totalorder %s441, 15
      %s443 = scalar_select %p442, %s441, 15
      %s444 = smul.u32 %s443, 16
      %s445 = scalar_lea.vmem %s373, %s444
      %v446 = vld [vmem:[%s445] sm:$0xff]
      %v447 = vld [vmem:[%s445 + $0x8] sm:$0xff]
      %s448 = sadd.s32 %s385, 6
      %p449 = scmp.gt.s32.totalorder %s448, 0
      %s450 = scalar_select %p449, %s448, 0
      %p451 = scmp.lt.s32.totalorder %s450, 15
      %s452 = scalar_select %p451, %s450, 15
      %s453 = smul.u32 %s452, 16
      %s454 = scalar_lea.vmem %s373, %s453
      %v455 = vld [vmem:[%s454] sm:$0xff]
      %v456 = vld [vmem:[%s454 + $0x8] sm:$0xff]
      %s457 = sadd.s32 %s385, 7
      %p458 = scmp.gt.s32.totalorder %s457, 0
      %s459 = scalar_select %p458, %s457, 0
      %p460 = scmp.lt.s32.totalorder %s459, 15
      %s461 = scalar_select %p460, %s459, 15
      %s462 = smul.u32 %s461, 16
      %s463 = scalar_lea.vmem %s373, %s462
      %v464 = vld [vmem:[%s463] sm:$0xff]
      %v465 = vld [vmem:[%s463 + $0x8] sm:$0xff]
      %s466 = sadd.s32 %s385, 8
      %p467 = scmp.gt.s32.totalorder %s466, 0
      %s468 = scalar_select %p467, %s466, 0
      %p469 = scmp.lt.s32.totalorder %s468, 15
      %s470 = scalar_select %p469, %s468, 15
      %s471 = smul.u32 %s470, 16
      %s472 = scalar_lea.vmem %s373, %s471
      %v473 = vld [vmem:[%s472] sm:$0xff]
      %v474 = vld [vmem:[%s472 + $0x8] sm:$0xff]
      %v475 = vld [vmem:[%s1] sm:$0xff]
      %vm476 = vcmask 64512
      %v478 = vsel %vm476, %v393, 0
      %v481 = vsel %vm476, %v394, 0
      %v484 = vsel %vm476, %v401, 0
      %v487 = vsel %vm476, %v402, 0
      %v490 = vsel %vm476, %v410, 0
      %v493 = vsel %vm476, %v411, 0
      %v496 = vsel %vm476, %v419, 0
      %v499 = vsel %vm476, %v420, 0
      %v502 = vsel %vm476, %v428, 0
      %v505 = vsel %vm476, %v429, 0
      %v508 = vsel %vm476, %v437, 0
      %v511 = vsel %vm476, %v438, 0
      %v514 = vsel %vm476, %v446, 0
      %v517 = vsel %vm476, %v447, 0
      %v520 = vsel %vm476, %v455, 0
      %v523 = vsel %vm476, %v456, 0
      %v526 = vsel %vm476, %v464, 0
      %v529 = vsel %vm476, %v465, 0
      %v532 = vsel %vm476, %v473, 0
      %v535 = vsel %vm476, %v474, 0
      %537 = vmatpush.msra.mxu0 0.0
      %538 = vmatpush.msra.mxu0 0.0
      %539 = vmatpush.msra.mxu0 0.0
      %540 = vmatpush.msra.mxu0 0.0
      %541 = vmatpush.msra.mxu0 0.0
      %542 = vmatpush.msra.mxu0 0.0
      %543 = vmatpush.msra.mxu0 0.0
      %544 = vmatpush.msra.mxu0 0.0
      %545 = vmatpush.msra.mxu0 0.0
      %546 = vmatpush.msra.mxu0 0.0
      %547 = vmatpush.msra.mxu0 0.0
      %548 = vmatpush.msra.mxu0 0.0
      %549 = vmatpush.msra.mxu0 0.0
      %550 = vmatpush.msra.mxu0 0.0
      %551 = vmatpush.msra.mxu0 0.0
      %552 = vmatpush.msra.mxu0 %v475
      %553 = vmatmul.f32.gmra.mxu0 %v478
      %v554 = vpop.f32.mrf.mxu0
      %v555 = vadd.f32 0.0, %v554
      %556 = vmatmul.f32.gmra.mxu0 %v481
      %v557 = vpop.f32.mrf.mxu0
      %v558 = vadd.f32 0.0, %v557
      %559 = vmatmul.f32.gmra.mxu0 %v484
      %v560 = vpop.f32.mrf.mxu0
      %v561 = vadd.f32 0.0, %v560
      %562 = vmatmul.f32.gmra.mxu0 %v487
      %v563 = vpop.f32.mrf.mxu0
      %v564 = vadd.f32 0.0, %v563
      %565 = vmatmul.f32.gmra.mxu0 %v490
      %v566 = vpop.f32.mrf.mxu0
      %v567 = vadd.f32 0.0, %v566
      %568 = vmatmul.f32.gmra.mxu0 %v493
      %v569 = vpop.f32.mrf.mxu0
      %v570 = vadd.f32 0.0, %v569
      %571 = vmatmul.f32.gmra.mxu0 %v496
      %v572 = vpop.f32.mrf.mxu0
      %v573 = vadd.f32 0.0, %v572
      %574 = vmatmul.f32.gmra.mxu0 %v499
      %v575 = vpop.f32.mrf.mxu0
      %v576 = vadd.f32 0.0, %v575
      %577 = vmatmul.f32.gmra.mxu0 %v502
      %v578 = vpop.f32.mrf.mxu0
      %v579 = vadd.f32 0.0, %v578
      %580 = vmatmul.f32.gmra.mxu0 %v505
      %v581 = vpop.f32.mrf.mxu0
      %v582 = vadd.f32 0.0, %v581
      %583 = vmatmul.f32.gmra.mxu0 %v508
      %v584 = vpop.f32.mrf.mxu0
      %v585 = vadd.f32 0.0, %v584
      %586 = vmatmul.f32.gmra.mxu0 %v511
      %v587 = vpop.f32.mrf.mxu0
      %v588 = vadd.f32 0.0, %v587
      %589 = vmatmul.f32.gmra.mxu0 %v514
      %v590 = vpop.f32.mrf.mxu0
      %v591 = vadd.f32 0.0, %v590
      %592 = vmatmul.f32.gmra.mxu0 %v517
      %v593 = vpop.f32.mrf.mxu0
      %v594 = vadd.f32 0.0, %v593
      %595 = vmatmul.f32.gmra.mxu0 %v520
      %v596 = vpop.f32.mrf.mxu0
      %v597 = vadd.f32 0.0, %v596
      %598 = vmatmul.f32.gmra.mxu0 %v523
      %v599 = vpop.f32.mrf.mxu0
      %v600 = vadd.f32 0.0, %v599
      %601 = vmatmul.f32.gmra.mxu0 %v526
      %v602 = vpop.f32.mrf.mxu0
      %v603 = vadd.f32 0.0, %v602
      %604 = vmatmul.f32.gmra.mxu0 %v529
      %v605 = vpop.f32.mrf.mxu0
      %v606 = vadd.f32 0.0, %v605
      %607 = vmatmul.f32.gmra.mxu0 %v532
      %v608 = vpop.f32.mrf.mxu0
      %v609 = vadd.f32 0.0, %v608
      %610 = vmatmul.f32.gmra.mxu0 %v535
      %v611 = vpop.f32.mrf.mxu0
      %v612 = vadd.f32 0.0, %v611
      %613 = vdwg.mxu0
      %v614 = vld [vmem:[%s2] sm:$0x1]
      %v616 = vperm.slane %v614, 0
      %v618 = vmul.f32 %v555, %v616
      %v619 = vmul.f32 %v558, %v616
      %v620 = vmul.f32 %v561, %v616
      %v621 = vmul.f32 %v564, %v616
      %v622 = vmul.f32 %v567, %v616
      %v623 = vmul.f32 %v570, %v616
      %v624 = vmul.f32 %v573, %v616
      %v625 = vmul.f32 %v576, %v616
      %v626 = vmul.f32 %v579, %v616
      %v627 = vmul.f32 %v582, %v616
      %v628 = vmul.f32 %v585, %v616
      %v629 = vmul.f32 %v588, %v616
      %v630 = vmul.f32 %v591, %v616
      %v631 = vmul.f32 %v594, %v616
      %v632 = vmul.f32 %v597, %v616
      %v633 = vmul.f32 %v600, %v616
      %v634 = vmul.f32 %v603, %v616
      %v635 = vmul.f32 %v606, %v616
      %v636 = vmul.f32 %v609, %v616
      %v637 = vmul.f32 %v612, %v616
      %v638 = vld [vmem:[%s3] sm:$0x1]
      %v640 = vperm.slane %v638, 0
      %v642 = vadd.f32 %v618, %v640
      %v643 = vadd.f32 %v619, %v640
      %v644 = vadd.f32 %v620, %v640
      %v645 = vadd.f32 %v621, %v640
      %v646 = vadd.f32 %v622, %v640
      %v647 = vadd.f32 %v623, %v640
      %v648 = vadd.f32 %v624, %v640
      %v649 = vadd.f32 %v625, %v640
      %v650 = vadd.f32 %v626, %v640
      %v651 = vadd.f32 %v627, %v640
      %v652 = vadd.f32 %v628, %v640
      %v653 = vadd.f32 %v629, %v640
      %v654 = vadd.f32 %v630, %v640
      %v655 = vadd.f32 %v631, %v640
      %v656 = vadd.f32 %v632, %v640
      %v657 = vadd.f32 %v633, %v640
      %v658 = vadd.f32 %v634, %v640
      %v659 = vadd.f32 %v635, %v640
      %v660 = vadd.f32 %v636, %v640
      %v661 = vadd.f32 %v637, %v640
      %v662 = vmax.f32 %v642, 0.0
      %v663 = vmax.f32 %v643, 0.0
      %v664 = vmax.f32 %v644, 0.0
      %v665 = vmax.f32 %v645, 0.0
      %v666 = vmax.f32 %v646, 0.0
      %v667 = vmax.f32 %v647, 0.0
      %v668 = vmax.f32 %v648, 0.0
      %v669 = vmax.f32 %v649, 0.0
      %v670 = vmax.f32 %v650, 0.0
      %v671 = vmax.f32 %v651, 0.0
      %v672 = vmax.f32 %v652, 0.0
      %v673 = vmax.f32 %v653, 0.0
      %v674 = vmax.f32 %v654, 0.0
      %v675 = vmax.f32 %v655, 0.0
      %v676 = vmax.f32 %v656, 0.0
      %v677 = vmax.f32 %v657, 0.0
      %v678 = vmax.f32 %v658, 0.0
      %v679 = vmax.f32 %v659, 0.0
      %v680 = vmax.f32 %v660, 0.0
      %v681 = vmax.f32 %v661, 0.0
      %v682 = vmin.f32 %v662, 6.0
      %v683 = vmin.f32 %v663, 6.0
      %v684 = vmin.f32 %v664, 6.0
      %v685 = vmin.f32 %v665, 6.0
      %v686 = vmin.f32 %v666, 6.0
      %v687 = vmin.f32 %v667, 6.0
      %v688 = vmin.f32 %v668, 6.0
      %v689 = vmin.f32 %v669, 6.0
      %v690 = vmin.f32 %v670, 6.0
      %v691 = vmin.f32 %v671, 6.0
      %v692 = vmin.f32 %v672, 6.0
      %v693 = vmin.f32 %v673, 6.0
      %v694 = vmin.f32 %v674, 6.0
      %v695 = vmin.f32 %v675, 6.0
      %v696 = vmin.f32 %v676, 6.0
      %v697 = vmin.f32 %v677, 6.0
      %v698 = vmin.f32 %v678, 6.0
      %v699 = vmin.f32 %v679, 6.0
      %v700 = vmin.f32 %v680, 6.0
      %v701 = vmin.f32 %v681, 6.0
      %v702 = vstv %s386
      %v703 = vadd.s32 %v702, 1
      %v704 = vadd.s32 %v702, 2
      %v705 = vadd.s32 %v702, 3
      %v706 = vadd.s32 %v702, 4
      %v707 = vadd.s32 %v702, 5
      %v708 = vadd.s32 %v702, 6
      %v709 = vadd.s32 %v702, 7
      %v710 = vadd.s32 %v702, 8
      %v711 = vadd.s32 %v702, 9
      %vm712 = vcmp.ge.s32.totalorder %v702, 0
      %vm713 = vcmp.ge.s32.totalorder %v703, 0
      %vm714 = vcmp.ge.s32.totalorder %v704, 0
      %vm715 = vcmp.ge.s32.totalorder %v705, 0
      %vm716 = vcmp.ge.s32.totalorder %v706, 0
      %vm717 = vcmp.ge.s32.totalorder %v707, 0
      %vm718 = vcmp.ge.s32.totalorder %v708, 0
      %vm719 = vcmp.ge.s32.totalorder %v709, 0
      %vm720 = vcmp.ge.s32.totalorder %v710, 0
      %vm721 = vcmp.ge.s32.totalorder %v711, 0
      %vm722 = vcmp.lt.s32.totalorder %v702, 16
      %vm723 = vcmp.lt.s32.totalorder %v703, 16
      %vm724 = vcmp.lt.s32.totalorder %v704, 16
      %vm725 = vcmp.lt.s32.totalorder %v705, 16
      %vm726 = vcmp.lt.s32.totalorder %v706, 16
      %vm727 = vcmp.lt.s32.totalorder %v707, 16
      %vm728 = vcmp.lt.s32.totalorder %v708, 16
      %vm729 = vcmp.lt.s32.totalorder %v709, 16
      %vm730 = vcmp.lt.s32.totalorder %v710, 16
      %vm731 = vcmp.lt.s32.totalorder %v711, 16
      %vm732 = vmand %vm712, %vm722
      %vm733 = vmand %vm713, %vm723
      %vm734 = vmand %vm714, %vm724
      %vm735 = vmand %vm715, %vm725
      %vm736 = vmand %vm716, %vm726
      %vm737 = vmand %vm717, %vm727
      %vm738 = vmand %vm718, %vm728
      %vm739 = vmand %vm719, %vm729
      %vm740 = vmand %vm720, %vm730
      %vm741 = vmand %vm721, %vm731
      %v742 = vsel %vm732, 1, 0
      %v743 = vsel %vm733, 1, 0
      %v744 = vsel %vm734, 1, 0
      %v745 = vsel %vm735, 1, 0
      %v746 = vsel %vm736, 1, 0
      %v747 = vsel %vm737, 1, 0
      %v748 = vsel %vm738, 1, 0
      %v749 = vsel %vm739, 1, 0
      %v750 = vsel %vm740, 1, 0
      %v751 = vsel %vm741, 1, 0
      %v752 = vcvt.s32.f32 %v742
      %v753 = vcvt.s32.f32 %v743
      %v754 = vcvt.s32.f32 %v744
      %v755 = vcvt.s32.f32 %v745
      %v756 = vcvt.s32.f32 %v746
      %v757 = vcvt.s32.f32 %v747
      %v758 = vcvt.s32.f32 %v748
      %v759 = vcvt.s32.f32 %v749
      %v760 = vcvt.s32.f32 %v750
      %v761 = vcvt.s32.f32 %v751
      %v762 = vmul.f32 %v682, %v752
      %v763 = vmul.f32 %v683, %v752
      %v764 = vmul.f32 %v684, %v753
      %v765 = vmul.f32 %v685, %v753
      %v766 = vmul.f32 %v686, %v754
      %v767 = vmul.f32 %v687, %v754
      %v768 = vmul.f32 %v688, %v755
      %v769 = vmul.f32 %v689, %v755
      %v770 = vmul.f32 %v690, %v756
      %v771 = vmul.f32 %v691, %v756
      %v772 = vmul.f32 %v692, %v757
      %v773 = vmul.f32 %v693, %v757
      %v774 = vmul.f32 %v694, %v758
      %v775 = vmul.f32 %v695, %v758
      %v776 = vmul.f32 %v696, %v759
      %v777 = vmul.f32 %v697, %v759
      %v778 = vmul.f32 %v698, %v760
      %v779 = vmul.f32 %v699, %v760
      %v780 = vmul.f32 %v700, %v761
      %v781 = vmul.f32 %v701, %v761
      %vm802 = vcmask 1040384
      %v803 = vrot.slane %v762, 7
      %v804 = vrot.slane %v763, 7
      %v805 = vsel %vm802, %v803, %v804
      %v806 = vrot.slane %v764, 7
      %v807 = vrot.slane %v765, 7
      %v808 = vsel %vm802, %v806, %v807
      %v809 = vrot.slane %v766, 7
      %v810 = vrot.slane %v767, 7
      %v811 = vsel %vm802, %v809, %v810
      %v812 = vrot.slane %v768, 7
      %v813 = vrot.slane %v769, 7
      %v814 = vsel %vm802, %v812, %v813
      %v815 = vrot.slane %v770, 7
      %v816 = vrot.slane %v771, 7
      %v817 = vsel %vm802, %v815, %v816
      %v818 = vrot.slane %v772, 7
      %v819 = vrot.slane %v773, 7
      %v820 = vsel %vm802, %v818, %v819
      %v821 = vrot.slane %v774, 7
      %v822 = vrot.slane %v775, 7
      %v823 = vsel %vm802, %v821, %v822
      %v824 = vrot.slane %v776, 7
      %v825 = vrot.slane %v777, 7
      %v826 = vsel %vm802, %v824, %v825
      %v827 = vrot.slane %v778, 7
      %v828 = vrot.slane %v779, 7
      %v829 = vsel %vm802, %v827, %v828
      %v830 = vrot.slane %v780, 7
      %v831 = vrot.slane %v781, 7
      %v832 = vsel %vm802, %v830, %v831
      %v863 = vsel %vm802, 0.0, %v803
      %v864 = vsel %vm802, 0.0, %v806
      %v865 = vsel %vm802, 0.0, %v809
      %v866 = vsel %vm802, 0.0, %v812
      %v867 = vsel %vm802, 0.0, %v815
      %v868 = vsel %vm802, 0.0, %v818
      %v869 = vsel %vm802, 0.0, %v821
      %v870 = vsel %vm802, 0.0, %v824
      %v871 = vsel %vm802, 0.0, %v827
      %v872 = vsel %vm802, 0.0, %v830
      %v873 = vsel %vm802, %v804, 0.0
      %v874 = vsel %vm802, %v807, 0.0
      %v875 = vsel %vm802, %v810, 0.0
      %v876 = vsel %vm802, %v813, 0.0
      %v877 = vsel %vm802, %v816, 0.0
      %v878 = vsel %vm802, %v819, 0.0
      %v879 = vsel %vm802, %v822, 0.0
      %v880 = vsel %vm802, %v825, 0.0
      %v881 = vsel %vm802, %v828, 0.0
      %v882 = vsel %vm802, %v831, 0.0
      %v883 = vld [vmem:[%s4] sm:$0x1]
      %v884 = vperm.slane %v883, 0
      %v885 = vmul.f32 %v863, %v884
      %v886 = vmul.f32 %v805, %v884
      %v887 = vmul.f32 %v864, %v884
      %v888 = vmul.f32 %v808, %v884
      %v889 = vmul.f32 %v865, %v884
      %v890 = vmul.f32 %v811, %v884
      %v891 = vmul.f32 %v866, %v884
      %v892 = vmul.f32 %v814, %v884
      %v893 = vmul.f32 %v867, %v884
      %v894 = vmul.f32 %v817, %v884
      %v895 = vmul.f32 %v868, %v884
      %v896 = vmul.f32 %v820, %v884
      %v897 = vmul.f32 %v869, %v884
      %v898 = vmul.f32 %v823, %v884
      %v899 = vmul.f32 %v870, %v884
      %v900 = vmul.f32 %v826, %v884
      %v901 = vadd.f32 %v885, 0.0
      %v902 = vadd.f32 %v886, 0.0
      %v903 = vadd.f32 %v887, 0.0
      %v904 = vadd.f32 %v888, 0.0
      %v905 = vadd.f32 %v889, 0.0
      %v906 = vadd.f32 %v890, 0.0
      %v907 = vadd.f32 %v891, 0.0
      %v908 = vadd.f32 %v892, 0.0
      %v909 = vadd.f32 %v893, 0.0
      %v910 = vadd.f32 %v894, 0.0
      %v911 = vadd.f32 %v895, 0.0
      %v912 = vadd.f32 %v896, 0.0
      %v913 = vadd.f32 %v897, 0.0
      %v914 = vadd.f32 %v898, 0.0
      %v915 = vadd.f32 %v899, 0.0
      %v916 = vadd.f32 %v900, 0.0
      %v917 = vld [vmem:[%s4 + $0x1] sm:$0x1]
      %v918 = vperm.slane %v917, 0
      %v919 = vmul.f32 %v863, %v918
      %v920 = vmul.f32 %v805, %v918
      %v921 = vmul.f32 %v873, %v918
      %v922 = vmul.f32 %v864, %v918
      %v923 = vmul.f32 %v808, %v918
      %v924 = vmul.f32 %v874, %v918
      %v925 = vmul.f32 %v865, %v918
      %v926 = vmul.f32 %v811, %v918
      %v927 = vmul.f32 %v875, %v918
      %v928 = vmul.f32 %v866, %v918
      %v929 = vmul.f32 %v814, %v918
      %v930 = vmul.f32 %v876, %v918
      %v931 = vmul.f32 %v867, %v918
      %v932 = vmul.f32 %v817, %v918
      %v933 = vmul.f32 %v877, %v918
      %v934 = vmul.f32 %v868, %v918
      %v935 = vmul.f32 %v820, %v918
      %v936 = vmul.f32 %v878, %v918
      %v937 = vmul.f32 %v869, %v918
      %v938 = vmul.f32 %v823, %v918
      %v939 = vmul.f32 %v879, %v918
      %v940 = vmul.f32 %v870, %v918
      %v941 = vmul.f32 %v826, %v918
      %v942 = vmul.f32 %v880, %v918
      %vm967 = vcmask 1046528
      %v968 = vrot.slane %v919, 1
      %v969 = vrot.slane %v920, 1
      %v970 = vsel %vm967, %v968, %v969
      %v971 = vrot.slane %v921, 1
      %v972 = vsel %vm967, %v969, %v971
      %v973 = vrot.slane %v922, 1
      %v974 = vrot.slane %v923, 1
      %v975 = vsel %vm967, %v973, %v974
      %v976 = vrot.slane %v924, 1
      %v977 = vsel %vm967, %v974, %v976
      %v978 = vrot.slane %v925, 1
      %v979 = vrot.slane %v926, 1
      %v980 = vsel %vm967, %v978, %v979
      %v981 = vrot.slane %v927, 1
      %v982 = vsel %vm967, %v979, %v981
      %v983 = vrot.slane %v928, 1
      %v984 = vrot.slane %v929, 1
      %v985 = vsel %vm967, %v983, %v984
      %v986 = vrot.slane %v930, 1
      %v987 = vsel %vm967, %v984, %v986
      %v988 = vrot.slane %v931, 1
      %v989 = vrot.slane %v932, 1
      %v990 = vsel %vm967, %v988, %v989
      %v991 = vrot.slane %v933, 1
      %v992 = vsel %vm967, %v989, %v991
      %v993 = vrot.slane %v934, 1
      %v994 = vrot.slane %v935, 1
      %v995 = vsel %vm967, %v993, %v994
      %v996 = vrot.slane %v936, 1
      %v997 = vsel %vm967, %v994, %v996
      %v998 = vrot.slane %v937, 1
      %v999 = vrot.slane %v938, 1
      %v1000 = vsel %vm967, %v998, %v999
      %v1001 = vrot.slane %v939, 1
      %v1002 = vsel %vm967, %v999, %v1001
      %v1003 = vrot.slane %v940, 1
      %v1004 = vrot.slane %v941, 1
      %v1005 = vsel %vm967, %v1003, %v1004
      %v1006 = vrot.slane %v942, 1
      %v1007 = vsel %vm967, %v1004, %v1006
      %v1024 = vadd.f32 %v901, %v970
      %v1025 = vadd.f32 %v902, %v972
      %v1026 = vadd.f32 %v903, %v975
      %v1027 = vadd.f32 %v904, %v977
      %v1028 = vadd.f32 %v905, %v980
      %v1029 = vadd.f32 %v906, %v982
      %v1030 = vadd.f32 %v907, %v985
      %v1031 = vadd.f32 %v908, %v987
      %v1032 = vadd.f32 %v909, %v990
      %v1033 = vadd.f32 %v910, %v992
      %v1034 = vadd.f32 %v911, %v995
      %v1035 = vadd.f32 %v912, %v997
      %v1036 = vadd.f32 %v913, %v1000
      %v1037 = vadd.f32 %v914, %v1002
      %v1038 = vadd.f32 %v915, %v1005
      %v1039 = vadd.f32 %v916, %v1007
      %v1040 = vld [vmem:[%s4 + $0x2] sm:$0x1]
      %v1041 = vperm.slane %v1040, 0
      %v1042 = vmul.f32 %v863, %v1041
      %v1043 = vmul.f32 %v805, %v1041
      %v1044 = vmul.f32 %v873, %v1041
      %v1045 = vmul.f32 %v864, %v1041
      %v1046 = vmul.f32 %v808, %v1041
      %v1047 = vmul.f32 %v874, %v1041
      %v1048 = vmul.f32 %v865, %v1041
      %v1049 = vmul.f32 %v811, %v1041
      %v1050 = vmul.f32 %v875, %v1041
      %v1051 = vmul.f32 %v866, %v1041
      %v1052 = vmul.f32 %v814, %v1041
      %v1053 = vmul.f32 %v876, %v1041
      %v1054 = vmul.f32 %v867, %v1041
      %v1055 = vmul.f32 %v817, %v1041
      %v1056 = vmul.f32 %v877, %v1041
      %v1057 = vmul.f32 %v868, %v1041
      %v1058 = vmul.f32 %v820, %v1041
      %v1059 = vmul.f32 %v878, %v1041
      %v1060 = vmul.f32 %v869, %v1041
      %v1061 = vmul.f32 %v823, %v1041
      %v1062 = vmul.f32 %v879, %v1041
      %v1063 = vmul.f32 %v870, %v1041
      %v1064 = vmul.f32 %v826, %v1041
      %v1065 = vmul.f32 %v880, %v1041
      %vm1090 = vcmask 1045504
      %v1091 = vrot.slane %v1042, 2
      %v1092 = vrot.slane %v1043, 2
      %v1093 = vsel %vm1090, %v1091, %v1092
      %v1094 = vrot.slane %v1044, 2
      %v1095 = vsel %vm1090, %v1092, %v1094
      %v1096 = vrot.slane %v1045, 2
      %v1097 = vrot.slane %v1046, 2
      %v1098 = vsel %vm1090, %v1096, %v1097
      %v1099 = vrot.slane %v1047, 2
      %v1100 = vsel %vm1090, %v1097, %v1099
      %v1101 = vrot.slane %v1048, 2
      %v1102 = vrot.slane %v1049, 2
      %v1103 = vsel %vm1090, %v1101, %v1102
      %v1104 = vrot.slane %v1050, 2
      %v1105 = vsel %vm1090, %v1102, %v1104
      %v1106 = vrot.slane %v1051, 2
      %v1107 = vrot.slane %v1052, 2
      %v1108 = vsel %vm1090, %v1106, %v1107
      %v1109 = vrot.slane %v1053, 2
      %v1110 = vsel %vm1090, %v1107, %v1109
      %v1111 = vrot.slane %v1054, 2
      %v1112 = vrot.slane %v1055, 2
      %v1113 = vsel %vm1090, %v1111, %v1112
      %v1114 = vrot.slane %v1056, 2
      %v1115 = vsel %vm1090, %v1112, %v1114
      %v1116 = vrot.slane %v1057, 2
      %v1117 = vrot.slane %v1058, 2
      %v1118 = vsel %vm1090, %v1116, %v1117
      %v1119 = vrot.slane %v1059, 2
      %v1120 = vsel %vm1090, %v1117, %v1119
      %v1121 = vrot.slane %v1060, 2
      %v1122 = vrot.slane %v1061, 2
      %v1123 = vsel %vm1090, %v1121, %v1122
      %v1124 = vrot.slane %v1062, 2
      %v1125 = vsel %vm1090, %v1122, %v1124
      %v1126 = vrot.slane %v1063, 2
      %v1127 = vrot.slane %v1064, 2
      %v1128 = vsel %vm1090, %v1126, %v1127
      %v1129 = vrot.slane %v1065, 2
      %v1130 = vsel %vm1090, %v1127, %v1129
      %v1147 = vadd.f32 %v1024, %v1093
      %v1148 = vadd.f32 %v1025, %v1095
      %v1149 = vadd.f32 %v1026, %v1098
      %v1150 = vadd.f32 %v1027, %v1100
      %v1151 = vadd.f32 %v1028, %v1103
      %v1152 = vadd.f32 %v1029, %v1105
      %v1153 = vadd.f32 %v1030, %v1108
      %v1154 = vadd.f32 %v1031, %v1110
      %v1155 = vadd.f32 %v1032, %v1113
      %v1156 = vadd.f32 %v1033, %v1115
      %v1157 = vadd.f32 %v1034, %v1118
      %v1158 = vadd.f32 %v1035, %v1120
      %v1159 = vadd.f32 %v1036, %v1123
      %v1160 = vadd.f32 %v1037, %v1125
      %v1161 = vadd.f32 %v1038, %v1128
      %v1162 = vadd.f32 %v1039, %v1130
      %v1163 = vld [vmem:[%s4 + $0x3] sm:$0x1]
      %v1164 = vperm.slane %v1163, 0
      %v1165 = vmul.f32 %v864, %v1164
      %v1166 = vmul.f32 %v808, %v1164
      %v1167 = vmul.f32 %v865, %v1164
      %v1168 = vmul.f32 %v811, %v1164
      %v1169 = vmul.f32 %v866, %v1164
      %v1170 = vmul.f32 %v814, %v1164
      %v1171 = vmul.f32 %v867, %v1164
      %v1172 = vmul.f32 %v817, %v1164
      %v1173 = vmul.f32 %v868, %v1164
      %v1174 = vmul.f32 %v820, %v1164
      %v1175 = vmul.f32 %v869, %v1164
      %v1176 = vmul.f32 %v823, %v1164
      %v1177 = vmul.f32 %v870, %v1164
      %v1178 = vmul.f32 %v826, %v1164
      %v1179 = vmul.f32 %v871, %v1164
      %v1180 = vmul.f32 %v829, %v1164
      %v1181 = vadd.f32 %v1147, %v1165
      %v1182 = vadd.f32 %v1148, %v1166
      %v1183 = vadd.f32 %v1149, %v1167
      %v1184 = vadd.f32 %v1150, %v1168
      %v1185 = vadd.f32 %v1151, %v1169
      %v1186 = vadd.f32 %v1152, %v1170
      %v1187 = vadd.f32 %v1153, %v1171
      %v1188 = vadd.f32 %v1154, %v1172
      %v1189 = vadd.f32 %v1155, %v1173
      %v1190 = vadd.f32 %v1156, %v1174
      %v1191 = vadd.f32 %v1157, %v1175
      %v1192 = vadd.f32 %v1158, %v1176
      %v1193 = vadd.f32 %v1159, %v1177
      %v1194 = vadd.f32 %v1160, %v1178
      %v1195 = vadd.f32 %v1161, %v1179
      %v1196 = vadd.f32 %v1162, %v1180
      %v1197 = vld [vmem:[%s4 + $0x4] sm:$0x1]
      %v1198 = vperm.slane %v1197, 0
      %v1199 = vmul.f32 %v864, %v1198
      %v1200 = vmul.f32 %v808, %v1198
      %v1201 = vmul.f32 %v874, %v1198
      %v1202 = vmul.f32 %v865, %v1198
      %v1203 = vmul.f32 %v811, %v1198
      %v1204 = vmul.f32 %v875, %v1198
      %v1205 = vmul.f32 %v866, %v1198
      %v1206 = vmul.f32 %v814, %v1198
      %v1207 = vmul.f32 %v876, %v1198
      %v1208 = vmul.f32 %v867, %v1198
      %v1209 = vmul.f32 %v817, %v1198
      %v1210 = vmul.f32 %v877, %v1198
      %v1211 = vmul.f32 %v868, %v1198
      %v1212 = vmul.f32 %v820, %v1198
      %v1213 = vmul.f32 %v878, %v1198
      %v1214 = vmul.f32 %v869, %v1198
      %v1215 = vmul.f32 %v823, %v1198
      %v1216 = vmul.f32 %v879, %v1198
      %v1217 = vmul.f32 %v870, %v1198
      %v1218 = vmul.f32 %v826, %v1198
      %v1219 = vmul.f32 %v880, %v1198
      %v1220 = vmul.f32 %v871, %v1198
      %v1221 = vmul.f32 %v829, %v1198
      %v1222 = vmul.f32 %v881, %v1198
      %v1247 = vrot.slane %v1199, 1
      %v1248 = vrot.slane %v1200, 1
      %v1249 = vsel %vm967, %v1247, %v1248
      %v1250 = vrot.slane %v1201, 1
      %v1251 = vsel %vm967, %v1248, %v1250
      %v1252 = vrot.slane %v1202, 1
      %v1253 = vrot.slane %v1203, 1
      %v1254 = vsel %vm967, %v1252, %v1253
      %v1255 = vrot.slane %v1204, 1
      %v1256 = vsel %vm967, %v1253, %v1255
      %v1257 = vrot.slane %v1205, 1
      %v1258 = vrot.slane %v1206, 1
      %v1259 = vsel %vm967, %v1257, %v1258
      %v1260 = vrot.slane %v1207, 1
      %v1261 = vsel %vm967, %v1258, %v1260
      %v1262 = vrot.slane %v1208, 1
      %v1263 = vrot.slane %v1209, 1
      %v1264 = vsel %vm967, %v1262, %v1263
      %v1265 = vrot.slane %v1210, 1
      %v1266 = vsel %vm967, %v1263, %v1265
      %v1267 = vrot.slane %v1211, 1
      %v1268 = vrot.slane %v1212, 1
      %v1269 = vsel %vm967, %v1267, %v1268
      %v1270 = vrot.slane %v1213, 1
      %v1271 = vsel %vm967, %v1268, %v1270
      %v1272 = vrot.slane %v1214, 1
      %v1273 = vrot.slane %v1215, 1
      %v1274 = vsel %vm967, %v1272, %v1273
      %v1275 = vrot.slane %v1216, 1
      %v1276 = vsel %vm967, %v1273, %v1275
      %v1277 = vrot.slane %v1217, 1
      %v1278 = vrot.slane %v1218, 1
      %v1279 = vsel %vm967, %v1277, %v1278
      %v1280 = vrot.slane %v1219, 1
      %v1281 = vsel %vm967, %v1278, %v1280
      %v1282 = vrot.slane %v1220, 1
      %v1283 = vrot.slane %v1221, 1
      %v1284 = vsel %vm967, %v1282, %v1283
      %v1285 = vrot.slane %v1222, 1
      %v1286 = vsel %vm967, %v1283, %v1285
      %v1303 = vadd.f32 %v1181, %v1249
      %v1304 = vadd.f32 %v1182, %v1251
      %v1305 = vadd.f32 %v1183, %v1254
      %v1306 = vadd.f32 %v1184, %v1256
      %v1307 = vadd.f32 %v1185, %v1259
      %v1308 = vadd.f32 %v1186, %v1261
      %v1309 = vadd.f32 %v1187, %v1264
      %v1310 = vadd.f32 %v1188, %v1266
      %v1311 = vadd.f32 %v1189, %v1269
      %v1312 = vadd.f32 %v1190, %v1271
      %v1313 = vadd.f32 %v1191, %v1274
      %v1314 = vadd.f32 %v1192, %v1276
      %v1315 = vadd.f32 %v1193, %v1279
      %v1316 = vadd.f32 %v1194, %v1281
      %v1317 = vadd.f32 %v1195, %v1284
      %v1318 = vadd.f32 %v1196, %v1286
      %v1319 = vld [vmem:[%s4 + $0x5] sm:$0x1]
      %v1320 = vperm.slane %v1319, 0
      %v1321 = vmul.f32 %v864, %v1320
      %v1322 = vmul.f32 %v808, %v1320
      %v1323 = vmul.f32 %v874, %v1320
      %v1324 = vmul.f32 %v865, %v1320
      %v1325 = vmul.f32 %v811, %v1320
      %v1326 = vmul.f32 %v875, %v1320
      %v1327 = vmul.f32 %v866, %v1320
      %v1328 = vmul.f32 %v814, %v1320
      %v1329 = vmul.f32 %v876, %v1320
      %v1330 = vmul.f32 %v867, %v1320
      %v1331 = vmul.f32 %v817, %v1320
      %v1332 = vmul.f32 %v877, %v1320
      %v1333 = vmul.f32 %v868, %v1320
      %v1334 = vmul.f32 %v820, %v1320
      %v1335 = vmul.f32 %v878, %v1320
      %v1336 = vmul.f32 %v869, %v1320
      %v1337 = vmul.f32 %v823, %v1320
      %v1338 = vmul.f32 %v879, %v1320
      %v1339 = vmul.f32 %v870, %v1320
      %v1340 = vmul.f32 %v826, %v1320
      %v1341 = vmul.f32 %v880, %v1320
      %v1342 = vmul.f32 %v871, %v1320
      %v1343 = vmul.f32 %v829, %v1320
      %v1344 = vmul.f32 %v881, %v1320
      %v1369 = vrot.slane %v1321, 2
      %v1370 = vrot.slane %v1322, 2
      %v1371 = vsel %vm1090, %v1369, %v1370
      %v1372 = vrot.slane %v1323, 2
      %v1373 = vsel %vm1090, %v1370, %v1372
      %v1374 = vrot.slane %v1324, 2
      %v1375 = vrot.slane %v1325, 2
      %v1376 = vsel %vm1090, %v1374, %v1375
      %v1377 = vrot.slane %v1326, 2
      %v1378 = vsel %vm1090, %v1375, %v1377
      %v1379 = vrot.slane %v1327, 2
      %v1380 = vrot.slane %v1328, 2
      %v1381 = vsel %vm1090, %v1379, %v1380
      %v1382 = vrot.slane %v1329, 2
      %v1383 = vsel %vm1090, %v1380, %v1382
      %v1384 = vrot.slane %v1330, 2
      %v1385 = vrot.slane %v1331, 2
      %v1386 = vsel %vm1090, %v1384, %v1385
      %v1387 = vrot.slane %v1332, 2
      %v1388 = vsel %vm1090, %v1385, %v1387
      %v1389 = vrot.slane %v1333, 2
      %v1390 = vrot.slane %v1334, 2
      %v1391 = vsel %vm1090, %v1389, %v1390
      %v1392 = vrot.slane %v1335, 2
      %v1393 = vsel %vm1090, %v1390, %v1392
      %v1394 = vrot.slane %v1336, 2
      %v1395 = vrot.slane %v1337, 2
      %v1396 = vsel %vm1090, %v1394, %v1395
      %v1397 = vrot.slane %v1338, 2
      %v1398 = vsel %vm1090, %v1395, %v1397
      %v1399 = vrot.slane %v1339, 2
      %v1400 = vrot.slane %v1340, 2
      %v1401 = vsel %vm1090, %v1399, %v1400
      %v1402 = vrot.slane %v1341, 2
      %v1403 = vsel %vm1090, %v1400, %v1402
      %v1404 = vrot.slane %v1342, 2
      %v1405 = vrot.slane %v1343, 2
      %v1406 = vsel %vm1090, %v1404, %v1405
      %v1407 = vrot.slane %v1344, 2
      %v1408 = vsel %vm1090, %v1405, %v1407
      %v1425 = vadd.f32 %v1303, %v1371
      %v1426 = vadd.f32 %v1304, %v1373
      %v1427 = vadd.f32 %v1305, %v1376
      %v1428 = vadd.f32 %v1306, %v1378
      %v1429 = vadd.f32 %v1307, %v1381
      %v1430 = vadd.f32 %v1308, %v1383
      %v1431 = vadd.f32 %v1309, %v1386
      %v1432 = vadd.f32 %v1310, %v1388
      %v1433 = vadd.f32 %v1311, %v1391
      %v1434 = vadd.f32 %v1312, %v1393
      %v1435 = vadd.f32 %v1313, %v1396
      %v1436 = vadd.f32 %v1314, %v1398
      %v1437 = vadd.f32 %v1315, %v1401
      %v1438 = vadd.f32 %v1316, %v1403
      %v1439 = vadd.f32 %v1317, %v1406
      %v1440 = vadd.f32 %v1318, %v1408
      %v1441 = vld [vmem:[%s4 + $0x6] sm:$0x1]
      %v1442 = vperm.slane %v1441, 0
      %v1443 = vmul.f32 %v865, %v1442
      %v1444 = vmul.f32 %v811, %v1442
      %v1445 = vmul.f32 %v866, %v1442
      %v1446 = vmul.f32 %v814, %v1442
      %v1447 = vmul.f32 %v867, %v1442
      %v1448 = vmul.f32 %v817, %v1442
      %v1449 = vmul.f32 %v868, %v1442
      %v1450 = vmul.f32 %v820, %v1442
      %v1451 = vmul.f32 %v869, %v1442
      %v1452 = vmul.f32 %v823, %v1442
      %v1453 = vmul.f32 %v870, %v1442
      %v1454 = vmul.f32 %v826, %v1442
      %v1455 = vmul.f32 %v871, %v1442
      %v1456 = vmul.f32 %v829, %v1442
      %v1457 = vmul.f32 %v872, %v1442
      %v1458 = vmul.f32 %v832, %v1442
      %v1459 = vadd.f32 %v1425, %v1443
      %v1460 = vadd.f32 %v1426, %v1444
      %v1461 = vadd.f32 %v1427, %v1445
      %v1462 = vadd.f32 %v1428, %v1446
      %v1463 = vadd.f32 %v1429, %v1447
      %v1464 = vadd.f32 %v1430, %v1448
      %v1465 = vadd.f32 %v1431, %v1449
      %v1466 = vadd.f32 %v1432, %v1450
      %v1467 = vadd.f32 %v1433, %v1451
      %v1468 = vadd.f32 %v1434, %v1452
      %v1469 = vadd.f32 %v1435, %v1453
      %v1470 = vadd.f32 %v1436, %v1454
      %v1471 = vadd.f32 %v1437, %v1455
      %v1472 = vadd.f32 %v1438, %v1456
      %v1473 = vadd.f32 %v1439, %v1457
      %v1474 = vadd.f32 %v1440, %v1458
      %v1475 = vld [vmem:[%s4 + $0x7] sm:$0x1]
      %v1476 = vperm.slane %v1475, 0
      %v1477 = vmul.f32 %v865, %v1476
      %v1478 = vmul.f32 %v811, %v1476
      %v1479 = vmul.f32 %v875, %v1476
      %v1480 = vmul.f32 %v866, %v1476
      %v1481 = vmul.f32 %v814, %v1476
      %v1482 = vmul.f32 %v876, %v1476
      %v1483 = vmul.f32 %v867, %v1476
      %v1484 = vmul.f32 %v817, %v1476
      %v1485 = vmul.f32 %v877, %v1476
      %v1486 = vmul.f32 %v868, %v1476
      %v1487 = vmul.f32 %v820, %v1476
      %v1488 = vmul.f32 %v878, %v1476
      %v1489 = vmul.f32 %v869, %v1476
      %v1490 = vmul.f32 %v823, %v1476
      %v1491 = vmul.f32 %v879, %v1476
      %v1492 = vmul.f32 %v870, %v1476
      %v1493 = vmul.f32 %v826, %v1476
      %v1494 = vmul.f32 %v880, %v1476
      %v1495 = vmul.f32 %v871, %v1476
      %v1496 = vmul.f32 %v829, %v1476
      %v1497 = vmul.f32 %v881, %v1476
      %v1498 = vmul.f32 %v872, %v1476
      %v1499 = vmul.f32 %v832, %v1476
      %v1500 = vmul.f32 %v882, %v1476
      %v1525 = vrot.slane %v1477, 1
      %v1526 = vrot.slane %v1478, 1
      %v1527 = vsel %vm967, %v1525, %v1526
      %v1528 = vrot.slane %v1479, 1
      %v1529 = vsel %vm967, %v1526, %v1528
      %v1530 = vrot.slane %v1480, 1
      %v1531 = vrot.slane %v1481, 1
      %v1532 = vsel %vm967, %v1530, %v1531
      %v1533 = vrot.slane %v1482, 1
      %v1534 = vsel %vm967, %v1531, %v1533
      %v1535 = vrot.slane %v1483, 1
      %v1536 = vrot.slane %v1484, 1
      %v1537 = vsel %vm967, %v1535, %v1536
      %v1538 = vrot.slane %v1485, 1
      %v1539 = vsel %vm967, %v1536, %v1538
      %v1540 = vrot.slane %v1486, 1
      %v1541 = vrot.slane %v1487, 1
      %v1542 = vsel %vm967, %v1540, %v1541
      %v1543 = vrot.slane %v1488, 1
      %v1544 = vsel %vm967, %v1541, %v1543
      %v1545 = vrot.slane %v1489, 1
      %v1546 = vrot.slane %v1490, 1
      %v1547 = vsel %vm967, %v1545, %v1546
      %v1548 = vrot.slane %v1491, 1
      %v1549 = vsel %vm967, %v1546, %v1548
      %v1550 = vrot.slane %v1492, 1
      %v1551 = vrot.slane %v1493, 1
      %v1552 = vsel %vm967, %v1550, %v1551
      %v1553 = vrot.slane %v1494, 1
      %v1554 = vsel %vm967, %v1551, %v1553
      %v1555 = vrot.slane %v1495, 1
      %v1556 = vrot.slane %v1496, 1
      %v1557 = vsel %vm967, %v1555, %v1556
      %v1558 = vrot.slane %v1497, 1
      %v1559 = vsel %vm967, %v1556, %v1558
      %v1560 = vrot.slane %v1498, 1
      %v1561 = vrot.slane %v1499, 1
      %v1562 = vsel %vm967, %v1560, %v1561
      %v1563 = vrot.slane %v1500, 1
      %v1564 = vsel %vm967, %v1561, %v1563
      %v1581 = vadd.f32 %v1459, %v1527
      %v1582 = vadd.f32 %v1460, %v1529
      %v1583 = vadd.f32 %v1461, %v1532
      %v1584 = vadd.f32 %v1462, %v1534
      %v1585 = vadd.f32 %v1463, %v1537
      %v1586 = vadd.f32 %v1464, %v1539
      %v1587 = vadd.f32 %v1465, %v1542
      %v1588 = vadd.f32 %v1466, %v1544
      %v1589 = vadd.f32 %v1467, %v1547
      %v1590 = vadd.f32 %v1468, %v1549
      %v1591 = vadd.f32 %v1469, %v1552
      %v1592 = vadd.f32 %v1470, %v1554
      %v1593 = vadd.f32 %v1471, %v1557
      %v1594 = vadd.f32 %v1472, %v1559
      %v1595 = vadd.f32 %v1473, %v1562
      %v1596 = vadd.f32 %v1474, %v1564
      %v1597 = vld [vmem:[%s4 + $0x8] sm:$0x1]
      %v1598 = vperm.slane %v1597, 0
      %v1599 = vmul.f32 %v865, %v1598
      %v1600 = vmul.f32 %v811, %v1598
      %v1601 = vmul.f32 %v875, %v1598
      %v1602 = vmul.f32 %v866, %v1598
      %v1603 = vmul.f32 %v814, %v1598
      %v1604 = vmul.f32 %v876, %v1598
      %v1605 = vmul.f32 %v867, %v1598
      %v1606 = vmul.f32 %v817, %v1598
      %v1607 = vmul.f32 %v877, %v1598
      %v1608 = vmul.f32 %v868, %v1598
      %v1609 = vmul.f32 %v820, %v1598
      %v1610 = vmul.f32 %v878, %v1598
      %v1611 = vmul.f32 %v869, %v1598
      %v1612 = vmul.f32 %v823, %v1598
      %v1613 = vmul.f32 %v879, %v1598
      %v1614 = vmul.f32 %v870, %v1598
      %v1615 = vmul.f32 %v826, %v1598
      %v1616 = vmul.f32 %v880, %v1598
      %v1617 = vmul.f32 %v871, %v1598
      %v1618 = vmul.f32 %v829, %v1598
      %v1619 = vmul.f32 %v881, %v1598
      %v1620 = vmul.f32 %v872, %v1598
      %v1621 = vmul.f32 %v832, %v1598
      %v1622 = vmul.f32 %v882, %v1598
      %v1647 = vrot.slane %v1599, 2
      %v1648 = vrot.slane %v1600, 2
      %v1649 = vsel %vm1090, %v1647, %v1648
      %v1650 = vrot.slane %v1601, 2
      %v1651 = vsel %vm1090, %v1648, %v1650
      %v1652 = vrot.slane %v1602, 2
      %v1653 = vrot.slane %v1603, 2
      %v1654 = vsel %vm1090, %v1652, %v1653
      %v1655 = vrot.slane %v1604, 2
      %v1656 = vsel %vm1090, %v1653, %v1655
      %v1657 = vrot.slane %v1605, 2
      %v1658 = vrot.slane %v1606, 2
      %v1659 = vsel %vm1090, %v1657, %v1658
      %v1660 = vrot.slane %v1607, 2
      %v1661 = vsel %vm1090, %v1658, %v1660
      %v1662 = vrot.slane %v1608, 2
      %v1663 = vrot.slane %v1609, 2
      %v1664 = vsel %vm1090, %v1662, %v1663
      %v1665 = vrot.slane %v1610, 2
      %v1666 = vsel %vm1090, %v1663, %v1665
      %v1667 = vrot.slane %v1611, 2
      %v1668 = vrot.slane %v1612, 2
      %v1669 = vsel %vm1090, %v1667, %v1668
      %v1670 = vrot.slane %v1613, 2
      %v1671 = vsel %vm1090, %v1668, %v1670
      %v1672 = vrot.slane %v1614, 2
      %v1673 = vrot.slane %v1615, 2
      %v1674 = vsel %vm1090, %v1672, %v1673
      %v1675 = vrot.slane %v1616, 2
      %v1676 = vsel %vm1090, %v1673, %v1675
      %v1677 = vrot.slane %v1617, 2
      %v1678 = vrot.slane %v1618, 2
      %v1679 = vsel %vm1090, %v1677, %v1678
      %v1680 = vrot.slane %v1619, 2
      %v1681 = vsel %vm1090, %v1678, %v1680
      %v1682 = vrot.slane %v1620, 2
      %v1683 = vrot.slane %v1621, 2
      %v1684 = vsel %vm1090, %v1682, %v1683
      %v1685 = vrot.slane %v1622, 2
      %v1686 = vsel %vm1090, %v1683, %v1685
      %v1703 = vadd.f32 %v1581, %v1649
      %v1704 = vadd.f32 %v1582, %v1651
      %v1705 = vadd.f32 %v1583, %v1654
      %v1706 = vadd.f32 %v1584, %v1656
      %v1707 = vadd.f32 %v1585, %v1659
      %v1708 = vadd.f32 %v1586, %v1661
      %v1709 = vadd.f32 %v1587, %v1664
      %v1710 = vadd.f32 %v1588, %v1666
      %v1711 = vadd.f32 %v1589, %v1669
      %v1712 = vadd.f32 %v1590, %v1671
      %v1713 = vadd.f32 %v1591, %v1674
      %v1714 = vadd.f32 %v1592, %v1676
      %v1715 = vadd.f32 %v1593, %v1679
      %v1716 = vadd.f32 %v1594, %v1681
      %v1717 = vadd.f32 %v1595, %v1684
      %v1718 = vadd.f32 %v1596, %v1686
      %v1719 = vld [vmem:[%s5] sm:$0x1]
      %v1721 = vperm.slane %v1719, 0
      %v1723 = vmul.f32 %v1703, %v1721
      %v1724 = vmul.f32 %v1704, %v1721
      %v1725 = vmul.f32 %v1705, %v1721
      %v1726 = vmul.f32 %v1706, %v1721
      %v1727 = vmul.f32 %v1707, %v1721
      %v1728 = vmul.f32 %v1708, %v1721
      %v1729 = vmul.f32 %v1709, %v1721
      %v1730 = vmul.f32 %v1710, %v1721
      %v1731 = vmul.f32 %v1711, %v1721
      %v1732 = vmul.f32 %v1712, %v1721
      %v1733 = vmul.f32 %v1713, %v1721
      %v1734 = vmul.f32 %v1714, %v1721
      %v1735 = vmul.f32 %v1715, %v1721
      %v1736 = vmul.f32 %v1716, %v1721
      %v1737 = vmul.f32 %v1717, %v1721
      %v1738 = vmul.f32 %v1718, %v1721
      %v1739 = vld [vmem:[%s6] sm:$0x1]
      %v1741 = vperm.slane %v1739, 0
      %v1743 = vadd.f32 %v1723, %v1741
      %v1744 = vadd.f32 %v1724, %v1741
      %v1745 = vadd.f32 %v1725, %v1741
      %v1746 = vadd.f32 %v1726, %v1741
      %v1747 = vadd.f32 %v1727, %v1741
      %v1748 = vadd.f32 %v1728, %v1741
      %v1749 = vadd.f32 %v1729, %v1741
      %v1750 = vadd.f32 %v1730, %v1741
      %v1751 = vadd.f32 %v1731, %v1741
      %v1752 = vadd.f32 %v1732, %v1741
      %v1753 = vadd.f32 %v1733, %v1741
      %v1754 = vadd.f32 %v1734, %v1741
      %v1755 = vadd.f32 %v1735, %v1741
      %v1756 = vadd.f32 %v1736, %v1741
      %v1757 = vadd.f32 %v1737, %v1741
      %v1758 = vadd.f32 %v1738, %v1741
      %v1759 = vmax.f32 %v1743, 0.0
      %v1760 = vmax.f32 %v1744, 0.0
      %v1761 = vmax.f32 %v1745, 0.0
      %v1762 = vmax.f32 %v1746, 0.0
      %v1763 = vmax.f32 %v1747, 0.0
      %v1764 = vmax.f32 %v1748, 0.0
      %v1765 = vmax.f32 %v1749, 0.0
      %v1766 = vmax.f32 %v1750, 0.0
      %v1767 = vmax.f32 %v1751, 0.0
      %v1768 = vmax.f32 %v1752, 0.0
      %v1769 = vmax.f32 %v1753, 0.0
      %v1770 = vmax.f32 %v1754, 0.0
      %v1771 = vmax.f32 %v1755, 0.0
      %v1772 = vmax.f32 %v1756, 0.0
      %v1773 = vmax.f32 %v1757, 0.0
      %v1774 = vmax.f32 %v1758, 0.0
      %v1775 = vmin.f32 %v1759, 6.0
      %v1776 = vmin.f32 %v1760, 6.0
      %v1777 = vmin.f32 %v1761, 6.0
      %v1778 = vmin.f32 %v1762, 6.0
      %v1779 = vmin.f32 %v1763, 6.0
      %v1780 = vmin.f32 %v1764, 6.0
      %v1781 = vmin.f32 %v1765, 6.0
      %v1782 = vmin.f32 %v1766, 6.0
      %v1783 = vmin.f32 %v1767, 6.0
      %v1784 = vmin.f32 %v1768, 6.0
      %v1785 = vmin.f32 %v1769, 6.0
      %v1786 = vmin.f32 %v1770, 6.0
      %v1787 = vmin.f32 %v1771, 6.0
      %v1788 = vmin.f32 %v1772, 6.0
      %v1789 = vmin.f32 %v1773, 6.0
      %v1790 = vmin.f32 %v1774, 6.0
      %v1791 = vld [vmem:[%s7] sm:$0xff]
      %v1792 = vld [vmem:[%s7 + $0x8] sm:$0xff]
      %v1793 = vld [vmem:[%s7 + $0x10] sm:$0xff]
      %v1794 = vld [vmem:[%s7 + $0x18] sm:$0xff]
      %vm1795 = vcmask 261120
      %v1797 = vsel %vm1795, %v1775, 0
      %v1800 = vsel %vm1795, %v1776, 0
      %v1803 = vsel %vm1795, %v1777, 0
      %v1806 = vsel %vm1795, %v1778, 0
      %v1809 = vsel %vm1795, %v1779, 0
      %v1812 = vsel %vm1795, %v1780, 0
      %v1815 = vsel %vm1795, %v1781, 0
      %v1818 = vsel %vm1795, %v1782, 0
      %v1821 = vsel %vm1795, %v1783, 0
      %v1824 = vsel %vm1795, %v1784, 0
      %v1827 = vsel %vm1795, %v1785, 0
      %v1830 = vsel %vm1795, %v1786, 0
      %v1833 = vsel %vm1795, %v1787, 0
      %v1836 = vsel %vm1795, %v1788, 0
      %v1839 = vsel %vm1795, %v1789, 0
      %v1842 = vsel %vm1795, %v1790, 0
      %1844 = vmatpush.msra.mxu0 0.0
      %1845 = vmatpush.msra.mxu0 0.0
      %1846 = vmatpush.msra.mxu0 0.0
      %1847 = vmatpush.msra.mxu0 0.0
      %1848 = vmatpush.msra.mxu0 0.0
      %1849 = vmatpush.msra.mxu0 0.0
      %1850 = vmatpush.msra.mxu0 0.0
      %1851 = vmatpush.msra.mxu0 0.0
      %1852 = vmatpush.msra.mxu0 0.0
      %1853 = vmatpush.msra.mxu0 0.0
      %1854 = vmatpush.msra.mxu0 0.0
      %1855 = vmatpush.msra.mxu0 0.0
      %1856 = vmatpush.msra.mxu0 %v1794
      %1857 = vmatpush.msra.mxu0 %v1793
      %1858 = vmatpush.msra.mxu0 %v1792
      %1859 = vmatpush.msra.mxu0 %v1791
      %1860 = vmatmul.f32.gmra.mxu0 %v1797
      %v1861 = vpop.f32.mrf.mxu0
      %v1862 = vadd.f32 0.0, %v1861
      %1863 = vmatmul.f32.gmra.mxu0 %v1800
      %v1864 = vpop.f32.mrf.mxu0
      %v1865 = vadd.f32 0.0, %v1864
      %1866 = vmatmul.f32.gmra.mxu0 %v1803
      %v1867 = vpop.f32.mrf.mxu0
      %v1868 = vadd.f32 0.0, %v1867
      %1869 = vmatmul.f32.gmra.mxu0 %v1806
      %v1870 = vpop.f32.mrf.mxu0
      %v1871 = vadd.f32 0.0, %v1870
      %1872 = vmatmul.f32.gmra.mxu0 %v1809
      %v1873 = vpop.f32.mrf.mxu0
      %v1874 = vadd.f32 0.0, %v1873
      %1875 = vmatmul.f32.gmra.mxu0 %v1812
      %v1876 = vpop.f32.mrf.mxu0
      %v1877 = vadd.f32 0.0, %v1876
      %1878 = vmatmul.f32.gmra.mxu0 %v1815
      %v1879 = vpop.f32.mrf.mxu0
      %v1880 = vadd.f32 0.0, %v1879
      %1881 = vmatmul.f32.gmra.mxu0 %v1818
      %v1882 = vpop.f32.mrf.mxu0
      %v1883 = vadd.f32 0.0, %v1882
      %1884 = vmatmul.f32.gmra.mxu0 %v1821
      %v1885 = vpop.f32.mrf.mxu0
      %v1886 = vadd.f32 0.0, %v1885
      %1887 = vmatmul.f32.gmra.mxu0 %v1824
      %v1888 = vpop.f32.mrf.mxu0
      %v1889 = vadd.f32 0.0, %v1888
      %1890 = vmatmul.f32.gmra.mxu0 %v1827
      %v1891 = vpop.f32.mrf.mxu0
      %v1892 = vadd.f32 0.0, %v1891
      %1893 = vmatmul.f32.gmra.mxu0 %v1830
      %v1894 = vpop.f32.mrf.mxu0
      %v1895 = vadd.f32 0.0, %v1894
      %1896 = vmatmul.f32.gmra.mxu0 %v1833
      %v1897 = vpop.f32.mrf.mxu0
      %v1898 = vadd.f32 0.0, %v1897
      %1899 = vmatmul.f32.gmra.mxu0 %v1836
      %v1900 = vpop.f32.mrf.mxu0
      %v1901 = vadd.f32 0.0, %v1900
      %1902 = vmatmul.f32.gmra.mxu0 %v1839
      %v1903 = vpop.f32.mrf.mxu0
      %v1904 = vadd.f32 0.0, %v1903
      %1905 = vmatmul.f32.gmra.mxu0 %v1842
      %v1906 = vpop.f32.mrf.mxu0
      %v1907 = vadd.f32 0.0, %v1906
      %1908 = vdwg.mxu0
      %v1909 = vld [vmem:[%s8] sm:$0x1]
      %v1911 = vperm.slane %v1909, 0
      %v1913 = vmul.f32 %v1862, %v1911
      %v1914 = vmul.f32 %v1865, %v1911
      %v1915 = vmul.f32 %v1868, %v1911
      %v1916 = vmul.f32 %v1871, %v1911
      %v1917 = vmul.f32 %v1874, %v1911
      %v1918 = vmul.f32 %v1877, %v1911
      %v1919 = vmul.f32 %v1880, %v1911
      %v1920 = vmul.f32 %v1883, %v1911
      %v1921 = vmul.f32 %v1886, %v1911
      %v1922 = vmul.f32 %v1889, %v1911
      %v1923 = vmul.f32 %v1892, %v1911
      %v1924 = vmul.f32 %v1895, %v1911
      %v1925 = vmul.f32 %v1898, %v1911
      %v1926 = vmul.f32 %v1901, %v1911
      %v1927 = vmul.f32 %v1904, %v1911
      %v1928 = vmul.f32 %v1907, %v1911
      %v1929 = vld [vmem:[%s9] sm:$0x1]
      %v1931 = vperm.slane %v1929, 0
      %v1933 = vadd.f32 %v1913, %v1931
      %v1934 = vadd.f32 %v1914, %v1931
      %v1935 = vadd.f32 %v1915, %v1931
      %v1936 = vadd.f32 %v1916, %v1931
      %v1937 = vadd.f32 %v1917, %v1931
      %v1938 = vadd.f32 %v1918, %v1931
      %v1939 = vadd.f32 %v1919, %v1931
      %v1940 = vadd.f32 %v1920, %v1931
      %v1941 = vadd.f32 %v1921, %v1931
      %v1942 = vadd.f32 %v1922, %v1931
      %v1943 = vadd.f32 %v1923, %v1931
      %v1944 = vadd.f32 %v1924, %v1931
      %v1945 = vadd.f32 %v1925, %v1931
      %v1946 = vadd.f32 %v1926, %v1931
      %v1947 = vadd.f32 %v1927, %v1931
      %v1948 = vadd.f32 %v1928, %v1931
      %s1949 = smul.u32 %s385, 16
      %s1950 = scalar_lea.vmem %s373, %s1949
      %v1951 = vld [vmem:[%s1950] sm:$0xff]
      %v1952 = vld [vmem:[%s1950 + $0x8] sm:$0xff]
      %v1953 = vld [vmem:[%s1950 + $0x10] sm:$0xff]
      %v1954 = vld [vmem:[%s1950 + $0x18] sm:$0xff]
      %v1955 = vld [vmem:[%s1950 + $0x20] sm:$0xff]
      %v1956 = vld [vmem:[%s1950 + $0x28] sm:$0xff]
      %v1957 = vld [vmem:[%s1950 + $0x30] sm:$0xff]
      %v1958 = vld [vmem:[%s1950 + $0x38] sm:$0xff]
      %v1959 = vld [vmem:[%s1950 + $0x40] sm:$0xff]
      %v1960 = vld [vmem:[%s1950 + $0x48] sm:$0xff]
      %v1961 = vld [vmem:[%s1950 + $0x50] sm:$0xff]
      %v1962 = vld [vmem:[%s1950 + $0x58] sm:$0xff]
      %v1963 = vld [vmem:[%s1950 + $0x60] sm:$0xff]
      %v1964 = vld [vmem:[%s1950 + $0x68] sm:$0xff]
      %v1965 = vld [vmem:[%s1950 + $0x70] sm:$0xff]
      %v1966 = vld [vmem:[%s1950 + $0x78] sm:$0xff]
      %v1967 = vadd.f32 %v1933, %v1951
      %v1968 = vadd.f32 %v1934, %v1952
      %v1969 = vadd.f32 %v1935, %v1953
      %v1970 = vadd.f32 %v1936, %v1954
      %v1971 = vadd.f32 %v1937, %v1955
      %v1972 = vadd.f32 %v1938, %v1956
      %v1973 = vadd.f32 %v1939, %v1957
      %v1974 = vadd.f32 %v1940, %v1958
      %v1975 = vadd.f32 %v1941, %v1959
      %v1976 = vadd.f32 %v1942, %v1960
      %v1977 = vadd.f32 %v1943, %v1961
      %v1978 = vadd.f32 %v1944, %v1962
      %v1979 = vadd.f32 %v1945, %v1963
      %v1980 = vadd.f32 %v1946, %v1964
      %v1981 = vadd.f32 %v1947, %v1965
      %v1982 = vadd.f32 %v1948, %v1966
      %1983 = vst.msk [vmem:[%s383] sm:$0xff] %vm476, %v1967
      %1984 = vst.msk [vmem:[%s383 + $0x8] sm:$0xff] %vm476, %v1968
      %1985 = vst.msk [vmem:[%s383 + $0x10] sm:$0xff] %vm476, %v1969
      %1986 = vst.msk [vmem:[%s383 + $0x18] sm:$0xff] %vm476, %v1970
      %1987 = vst.msk [vmem:[%s383 + $0x20] sm:$0xff] %vm476, %v1971
      %1988 = vst.msk [vmem:[%s383 + $0x28] sm:$0xff] %vm476, %v1972
      %1989 = vst.msk [vmem:[%s383 + $0x30] sm:$0xff] %vm476, %v1973
      %1990 = vst.msk [vmem:[%s383 + $0x38] sm:$0xff] %vm476, %v1974
      %1991 = vst.msk [vmem:[%s383 + $0x40] sm:$0xff] %vm476, %v1975
      %1992 = vst.msk [vmem:[%s383 + $0x48] sm:$0xff] %vm476, %v1976
      %1993 = vst.msk [vmem:[%s383 + $0x50] sm:$0xff] %vm476, %v1977
      %1994 = vst.msk [vmem:[%s383 + $0x58] sm:$0xff] %vm476, %v1978
      %1995 = vst.msk [vmem:[%s383 + $0x60] sm:$0xff] %vm476, %v1979
      %1996 = vst.msk [vmem:[%s383 + $0x68] sm:$0xff] %vm476, %v1980
      %1997 = vst.msk [vmem:[%s383 + $0x70] sm:$0xff] %vm476, %v1981
      %1998 = vst.msk [vmem:[%s383 + $0x78] sm:$0xff] %vm476, %v1982
      %s1999 = smul.u32 8, %s26
      %p2000 = scmp.lt.s32.totalorder %s25, 1
      %s2001 = scalar_select %p2000, %s25, 1
      %p2002 = scmp.lt.s32.totalorder %s1999, 15
      %s2003 = scalar_select %p2002, %s1999, 15
      %s2004 = smul.addr %s2003, 2
      %s2005 = smul.addr %s2001, 32
      %s2006 = sadd.s32 %s2004, %s2005
      %s2007 = smul.addr %s2006, 8
      %s2008 = scalar_lea.vmem %s10, %s2007
      // Predicated region
      $region61: #{inverted_residual.1} parent=59 // pred_check
        %p2009 = pneg %p268
      $region62: #{inverted_residual.1} parent=59 // pred_check_branch
        %2011 = sbr.rel (%p2009) target = $region64
      $region63: #{inverted_residual.1} parent=59 // pred_region
        %s2012 = smul.u32 8, %s26
      $region64: #{inverted_residual.1} parent=59 // pred_fallthru
        _
    $region60: #{inverted_residual.1} parent=5 // pred_fallthru
      _
    %p2013 = scmp.le.s32.totalorder 2, %s16
    // Predicated region
    $region65: #{inverted_residual.1} parent=5 // pred_check
      %p2014 = pneg %p2013
    $region66: #{inverted_residual.1} parent=5 // pred_check_branch
      %2016 = sbr.rel (%p2014) target = $region68
    $region67: #{inverted_residual.1} parent=5 // pred_region
      %s2017 = ssub.s32 %s16, 2
      // Predicated region
      $region69: #{inverted_residual.1} parent=67 // pred_check
        %p2018 = pneg %p274
      $region70: #{inverted_residual.1} parent=67 // pred_check_branch
        %2020 = sbr.rel (%p2018) target = $region72
      $region71: #{inverted_residual.1} parent=67 // pred_region
        %s2021 = smul.u32 8, %s28
        %p2022 = scmp.lt.s32.totalorder %s27, 1
        %s2023 = scalar_select %p2022, %s27, 1
        %p2024 = scmp.lt.s32.totalorder %s2021, 15
        %s2025 = scalar_select %p2024, %s2021, 15
        %s2026 = smul.addr %s2025, 2
        %s2027 = smul.addr %s2023, 32
        %s2028 = sadd.s32 %s2026, %s2027
        %s2029 = smul.addr %s2028, 8
        %s2030 = scalar_lea.vmem %s10, %s2029
      $region72: #{inverted_residual.1} parent=67 // pred_fallthru
        _
    $region68: #{inverted_residual.1} parent=5 // pred_fallthru
      _
  $region6: #{inverted_residual.1} parent=0 // loop_footer
    %s20 = sadd.s32 1, %s16
  $region7: #{inverted_residual.1} parent=0 // loop_footer_branch
    %15 = sbr.rel target = $region3
  $region8: #{inverted_residual.1} parent=0 // loop_exit
    _

</llo_original>
